<compile_context>
chip_gen: v7x
topology: tpu7x:2x2x1
jax: 0.10.0
libtpu: 0.0.40
codegen_flags: <defaults>
</compile_context>

<pallas_src>
import jax
import jax.numpy as jnp
from jax.experimental import pallas as pl
from jax.experimental.pallas import tpu as pltpu

IN_DIM = 28 * 28          # 784
N_CLASSES = 10
H1, H2, H3 = 512, 256, 1


def _cond_disc_kernel(x_ref, y_ref, wc_ref, tab_ref, b1_ref,
                      w2_ref, b2_ref, w3_ref, b3_ref, out_ref):
    # fc∘fc1 folded:  (B,784) bf16 @ (784,512) bf16 -> f32 accumulation (MXU).
    h1 = jnp.dot(x_ref[...], wc_ref[...],
                 preferred_element_type=jnp.float32)              # (B, 512)

    # + T[y] : gather from the fixed (10,512) class table via VPU selects.
    labels = y_ref[...]                                           # (B, 1) int32
    tab = tab_ref[...]                                            # (10, 512) f32
    lbl = jnp.zeros_like(h1)
    for cls in range(N_CLASSES):
        lbl = jnp.where(labels == cls, tab[cls:cls + 1, :], lbl)  # (B, 512)

    h1 = jnp.maximum(h1 + lbl + b1_ref[...], 0.0)                 # relu(fc1)

    # fc2 + relu
    h2 = jnp.dot(h1.astype(jnp.bfloat16), w2_ref[...],
                 preferred_element_type=jnp.float32) + b2_ref[...]
    h2 = jnp.maximum(h2, 0.0)                                     # (B, 256)

    # fc3 (256 -> 1) as a vector reduction instead of an N=1 MXU matmul.
    out = jnp.sum(h2 * w3_ref[...], axis=-1, keepdims=True) + b3_ref[0, 0]
    out_ref[...] = out.astype(out_ref.dtype)                      # (B, 1)


def init_params(key):
    """PyTorch-Linear-style uniform init, then fold fc into fc1 for the kernel."""
    def linear(k, fan_in, fan_out):
        kw, kb = jax.random.split(k)
        bound = 1.0 / jnp.sqrt(jnp.float32(fan_in))
        w = jax.random.uniform(kw, (fan_in, fan_out), jnp.float32, -bound, bound)
        b = jax.random.uniform(kb, (1, fan_out), jnp.float32, -bound, bound)
        return w, b

    k_fc, k1, k2, k3 = jax.random.split(key, 4)
    w_fc, b_fc = linear(k_fc, IN_DIM + N_CLASSES, IN_DIM)   # self.fc : 794 -> 784
    w1, b1 = linear(k1, IN_DIM, H1)                         # fc1 : 784 -> 512
    w2, b2 = linear(k2, H1, H2)                             # fc2 : 512 -> 256
    w3, b3 = linear(k3, H2, H3)                             # fc3 : 256 -> 1

    # forward cats [x_flat, one_hot], so W_fc rows [:784] act on x, [784:] on y.
    wc = w_fc[:IN_DIM] @ w1                                 # (784, 512) f32
    tab = w_fc[IN_DIM:] @ w1                                # (10, 512)  f32
    bias1 = b_fc @ w1 + b1                                  # (1, 512)   f32

    params = dict(
        wc=wc.astype(jnp.bfloat16),     # (784, 512) bf16  folded fc∘fc1 weight
        tab=tab,                        # (10, 512)  f32   per-class label table
        b1=bias1,                       # (1, 512)   f32   combined bias
        w2=w2.astype(jnp.bfloat16),     # (512, 256) bf16
        b2=b2,                          # (1, 256)   f32
        w3_row=w3.T,                    # (1, 256)   f32   row for VPU reduce
        b3=b3.reshape(1, 1),            # (1, 1)     f32   SMEM scalar
    )
    raw = dict(w_fc=w_fc, b_fc=b_fc, w1=w1, b1=b1, w2=w2, b2=b2, w3=w3, b3=b3)
    return params, raw


def cond_discriminator(x, y, params):
    """x: (B, 1, 28, 28) float, y: (B,) int labels in [0, 10)."""
    B = x.shape[0]
    x_flat = x.reshape(B, IN_DIM).astype(jnp.bfloat16)     # == x.view(B, -1)
    y2d = y.reshape(B, 1).astype(jnp.int32)

    args = (x_flat, y2d, params["wc"], params["tab"], params["b1"],
            params["w2"], params["b2"], params["w3_row"], params["b3"])

    flops = 2 * B * (IN_DIM * H1 + H1 * H2 + H2 * H3)
    bytes_accessed = int(sum(int(a.size) * a.dtype.itemsize for a in args)) + B * H3 * 4
    cost = pl.CostEstimate(flops=flops, transcendentals=0,
                           bytes_accessed=bytes_accessed)

    vmem = lambda: pl.BlockSpec(memory_space=pltpu.MemorySpace.VMEM)
    in_specs = [vmem() for _ in range(8)] + [
        pl.BlockSpec(memory_space=pltpu.MemorySpace.SMEM)]   # b3 scalar in SMEM

    # Single invocation (no grid): everything lives in VMEM for the whole call,
    # no accumulator scratch, no double-buffering to pay for.
    return pl.pallas_call(
        _cond_disc_kernel,
        out_shape=jax.ShapeDtypeStruct((B, H3), jnp.float32),
        in_specs=in_specs,
        out_specs=vmem(),
        cost_estimate=cost,
    )(*args)


def _reference_folded(x, y, params):
    """Same math (same bf16 rounding points as the kernel) in plain JAX."""
    B = x.shape[0]
    x_flat = x.reshape(B, IN_DIM).astype(jnp.bfloat16)
    h1 = (jnp.dot(x_flat, params["wc"], preferred_element_type=jnp.float32)
          + params["tab"][y] + params["b1"])
    h1 = jnp.maximum(h1, 0.0)
    h2 = jnp.maximum(jnp.dot(h1.astype(jnp.bfloat16), params["w2"],
                             preferred_element_type=jnp.float32) + params["b2"], 0.0)
    return jnp.sum(h2 * params["w3_row"], axis=-1, keepdims=True) + params["b3"]


def _reference_f32(x, y, raw):
    """Original (unfolded) module structure in full f32."""
    B = x.shape[0]
    x_flat = x.reshape(B, IN_DIM)
    one_hot = jax.nn.one_hot(y, N_CLASSES, dtype=jnp.float32)
    h = jnp.concatenate([x_flat, one_hot], axis=-1) @ raw["w_fc"] + raw["b_fc"]
    h1 = jnp.maximum(h @ raw["w1"] + raw["b1"], 0.0)
    h2 = jnp.maximum(h1 @ raw["w2"] + raw["b2"], 0.0)
    return h2 @ raw["w3"] + raw["b3"]


if __name__ == "__main__":
    key = jax.random.PRNGKey(0)
    k_params, k_x, k_y = jax.random.split(key, 3)

    B = 16   # multiple of 8 sublanes; keep bf16 rows fully packed
    params, raw = init_params(k_params)
    x = jax.random.normal(k_x, (B, 1, 28, 28), jnp.float32)
    y = jax.random.randint(k_y, (B,), 0, N_CLASSES, jnp.int32)

    out = jax.block_until_ready(cond_discriminator(x, y, params))
    ref_folded = jax.block_until_ready(_reference_folded(x, y, params))
    ref_f32 = jax.block_until_ready(_reference_f32(x, y, raw))

    assert out.shape == (B, H3), out.shape
    # Matches the folded bf16 reference tightly (same rounding points)...
    assert jnp.allclose(out, ref_folded, atol=5e-3, rtol=5e-3), (out, ref_folded)
    # ...and the original f32 module structure up to bf16 weight rounding.
    assert jnp.allclose(out, ref_f32, atol=5e-2, rtol=5e-2), (out, ref_f32)
    print("KERNEL_OK")
</pallas_src>

<mosaic_0001>
module attributes {stable_mosaic.version = 11 : i64} {
  func.func @_cond_disc_kernel(%arg0: memref<16x784xbf16, #tpu.memory_space<vmem>>, %arg1: memref<16x1xi32, #tpu.memory_space<vmem>>, %arg2: memref<784x512xbf16, #tpu.memory_space<vmem>>, %arg3: memref<10x512xf32, #tpu.memory_space<vmem>>, %arg4: memref<1x512xf32, #tpu.memory_space<vmem>>, %arg5: memref<512x256xbf16, #tpu.memory_space<vmem>>, %arg6: memref<1x256xf32, #tpu.memory_space<vmem>>, %arg7: memref<1x256xf32, #tpu.memory_space<vmem>>, %arg8: memref<1x1xf32, #tpu.memory_space<smem>>, %arg9: memref<16x1xf32, #tpu.memory_space<vmem>>) attributes {dimension_semantics = [], scalar_prefetch = 0 : i64, scratch_operands = 0 : i64, tpu.core_type = #tpu.core_type<tc>} {
    %c0 = arith.constant 0 : index
    %c0_0 = arith.constant 0 : index
    %0 = vector.load %arg0[%c0, %c0_0] : memref<16x784xbf16, #tpu.memory_space<vmem>>, vector<16x784xbf16>
    %c0_1 = arith.constant 0 : index
    %c0_2 = arith.constant 0 : index
    %1 = vector.load %arg2[%c0_1, %c0_2] : memref<784x512xbf16, #tpu.memory_space<vmem>>, vector<784x512xbf16>
    %cst = arith.constant dense<0.000000e+00> : vector<16x512xf32>
    %2 = tpu.matmul %0, %1, %cst {dimension_numbers = #tpu.dot_dimension_numbers<[1], [0], [0], [1], [0, 0, 1, 1], [], []>} : vector<16x784xbf16>, vector<784x512xbf16>, vector<16x512xf32> -> vector<16x512xf32>
    %c0_3 = arith.constant 0 : index
    %c0_4 = arith.constant 0 : index
    %3 = vector.load %arg1[%c0_3, %c0_4] : memref<16x1xi32, #tpu.memory_space<vmem>>, vector<16x1xi32>
    %c0_5 = arith.constant 0 : index
    %c0_6 = arith.constant 0 : index
    %4 = vector.load %arg3[%c0_5, %c0_6] : memref<10x512xf32, #tpu.memory_space<vmem>>, vector<10x512xf32>
    %cst_7 = arith.constant 0.000000e+00 : f32
    %5 = vector.broadcast %cst_7 : f32 to vector<16x512xf32>
    %c0_i32 = arith.constant 0 : i32
    %6 = vector.broadcast %c0_i32 : i32 to vector<16x1xi32>
    %7 = arith.cmpi eq, %3, %6 : vector<16x1xi32>
    %8 = vector.extract_strided_slice %4 {offsets = [0, 0], sizes = [1, 512], strides = [1, 1]} : vector<10x512xf32> to vector<1x512xf32>
    %9 = vector.shape_cast %7 : vector<16x1xi1> to vector<16x1xi1>
    %10 = vector.broadcast %9 : vector<16x1xi1> to vector<16x512xi1>
    %11 = vector.shape_cast %8 : vector<1x512xf32> to vector<1x512xf32>
    %12 = vector.broadcast %11 : vector<1x512xf32> to vector<16x512xf32>
    %13 = arith.select %10, %12, %5 : vector<16x512xi1>, vector<16x512xf32>
    %c1_i32 = arith.constant 1 : i32
    %14 = vector.broadcast %c1_i32 : i32 to vector<16x1xi32>
    %15 = arith.cmpi eq, %3, %14 : vector<16x1xi32>
    %16 = vector.extract_strided_slice %4 {offsets = [1, 0], sizes = [1, 512], strides = [1, 1]} : vector<10x512xf32> to vector<1x512xf32>
    %17 = vector.shape_cast %15 : vector<16x1xi1> to vector<16x1xi1>
    %18 = vector.broadcast %17 : vector<16x1xi1> to vector<16x512xi1>
    %19 = vector.shape_cast %16 : vector<1x512xf32> to vector<1x512xf32>
    %20 = vector.broadcast %19 : vector<1x512xf32> to vector<16x512xf32>
    %21 = arith.select %18, %20, %13 : vector<16x512xi1>, vector<16x512xf32>
    %c2_i32 = arith.constant 2 : i32
    %22 = vector.broadcast %c2_i32 : i32 to vector<16x1xi32>
    %23 = arith.cmpi eq, %3, %22 : vector<16x1xi32>
    %24 = vector.extract_strided_slice %4 {offsets = [2, 0], sizes = [1, 512], strides = [1, 1]} : vector<10x512xf32> to vector<1x512xf32>
    %25 = vector.shape_cast %23 : vector<16x1xi1> to vector<16x1xi1>
    %26 = vector.broadcast %25 : vector<16x1xi1> to vector<16x512xi1>
    %27 = vector.shape_cast %24 : vector<1x512xf32> to vector<1x512xf32>
    %28 = vector.broadcast %27 : vector<1x512xf32> to vector<16x512xf32>
    %29 = arith.select %26, %28, %21 : vector<16x512xi1>, vector<16x512xf32>
    %c3_i32 = arith.constant 3 : i32
    %30 = vector.broadcast %c3_i32 : i32 to vector<16x1xi32>
    %31 = arith.cmpi eq, %3, %30 : vector<16x1xi32>
    %32 = vector.extract_strided_slice %4 {offsets = [3, 0], sizes = [1, 512], strides = [1, 1]} : vector<10x512xf32> to vector<1x512xf32>
    %33 = vector.shape_cast %31 : vector<16x1xi1> to vector<16x1xi1>
    %34 = vector.broadcast %33 : vector<16x1xi1> to vector<16x512xi1>
    %35 = vector.shape_cast %32 : vector<1x512xf32> to vector<1x512xf32>
    %36 = vector.broadcast %35 : vector<1x512xf32> to vector<16x512xf32>
    %37 = arith.select %34, %36, %29 : vector<16x512xi1>, vector<16x512xf32>
    %c4_i32 = arith.constant 4 : i32
    %38 = vector.broadcast %c4_i32 : i32 to vector<16x1xi32>
    %39 = arith.cmpi eq, %3, %38 : vector<16x1xi32>
    %40 = vector.extract_strided_slice %4 {offsets = [4, 0], sizes = [1, 512], strides = [1, 1]} : vector<10x512xf32> to vector<1x512xf32>
    %41 = vector.shape_cast %39 : vector<16x1xi1> to vector<16x1xi1>
    %42 = vector.broadcast %41 : vector<16x1xi1> to vector<16x512xi1>
    %43 = vector.shape_cast %40 : vector<1x512xf32> to vector<1x512xf32>
    %44 = vector.broadcast %43 : vector<1x512xf32> to vector<16x512xf32>
    %45 = arith.select %42, %44, %37 : vector<16x512xi1>, vector<16x512xf32>
    %c5_i32 = arith.constant 5 : i32
    %46 = vector.broadcast %c5_i32 : i32 to vector<16x1xi32>
    %47 = arith.cmpi eq, %3, %46 : vector<16x1xi32>
    %48 = vector.extract_strided_slice %4 {offsets = [5, 0], sizes = [1, 512], strides = [1, 1]} : vector<10x512xf32> to vector<1x512xf32>
    %49 = vector.shape_cast %47 : vector<16x1xi1> to vector<16x1xi1>
    %50 = vector.broadcast %49 : vector<16x1xi1> to vector<16x512xi1>
    %51 = vector.shape_cast %48 : vector<1x512xf32> to vector<1x512xf32>
    %52 = vector.broadcast %51 : vector<1x512xf32> to vector<16x512xf32>
    %53 = arith.select %50, %52, %45 : vector<16x512xi1>, vector<16x512xf32>
    %c6_i32 = arith.constant 6 : i32
    %54 = vector.broadcast %c6_i32 : i32 to vector<16x1xi32>
    %55 = arith.cmpi eq, %3, %54 : vector<16x1xi32>
    %56 = vector.extract_strided_slice %4 {offsets = [6, 0], sizes = [1, 512], strides = [1, 1]} : vector<10x512xf32> to vector<1x512xf32>
    %57 = vector.shape_cast %55 : vector<16x1xi1> to vector<16x1xi1>
    %58 = vector.broadcast %57 : vector<16x1xi1> to vector<16x512xi1>
    %59 = vector.shape_cast %56 : vector<1x512xf32> to vector<1x512xf32>
    %60 = vector.broadcast %59 : vector<1x512xf32> to vector<16x512xf32>
    %61 = arith.select %58, %60, %53 : vector<16x512xi1>, vector<16x512xf32>
    %c7_i32 = arith.constant 7 : i32
    %62 = vector.broadcast %c7_i32 : i32 to vector<16x1xi32>
    %63 = arith.cmpi eq, %3, %62 : vector<16x1xi32>
    %64 = vector.extract_strided_slice %4 {offsets = [7, 0], sizes = [1, 512], strides = [1, 1]} : vector<10x512xf32> to vector<1x512xf32>
    %65 = vector.shape_cast %63 : vector<16x1xi1> to vector<16x1xi1>
    %66 = vector.broadcast %65 : vector<16x1xi1> to vector<16x512xi1>
    %67 = vector.shape_cast %64 : vector<1x512xf32> to vector<1x512xf32>
    %68 = vector.broadcast %67 : vector<1x512xf32> to vector<16x512xf32>
    %69 = arith.select %66, %68, %61 : vector<16x512xi1>, vector<16x512xf32>
    %c8_i32 = arith.constant 8 : i32
    %70 = vector.broadcast %c8_i32 : i32 to vector<16x1xi32>
    %71 = arith.cmpi eq, %3, %70 : vector<16x1xi32>
    %72 = vector.extract_strided_slice %4 {offsets = [8, 0], sizes = [1, 512], strides = [1, 1]} : vector<10x512xf32> to vector<1x512xf32>
    %73 = vector.shape_cast %71 : vector<16x1xi1> to vector<16x1xi1>
    %74 = vector.broadcast %73 : vector<16x1xi1> to vector<16x512xi1>
    %75 = vector.shape_cast %72 : vector<1x512xf32> to vector<1x512xf32>
    %76 = vector.broadcast %75 : vector<1x512xf32> to vector<16x512xf32>
    %77 = arith.select %74, %76, %69 : vector<16x512xi1>, vector<16x512xf32>
    %c9_i32 = arith.constant 9 : i32
    %78 = vector.broadcast %c9_i32 : i32 to vector<16x1xi32>
    %79 = arith.cmpi eq, %3, %78 : vector<16x1xi32>
    %80 = vector.extract_strided_slice %4 {offsets = [9, 0], sizes = [1, 512], strides = [1, 1]} : vector<10x512xf32> to vector<1x512xf32>
    %81 = vector.shape_cast %79 : vector<16x1xi1> to vector<16x1xi1>
    %82 = vector.broadcast %81 : vector<16x1xi1> to vector<16x512xi1>
    %83 = vector.shape_cast %80 : vector<1x512xf32> to vector<1x512xf32>
    %84 = vector.broadcast %83 : vector<1x512xf32> to vector<16x512xf32>
    %85 = arith.select %82, %84, %77 : vector<16x512xi1>, vector<16x512xf32>
    %86 = arith.addf %2, %85 : vector<16x512xf32>
    %c0_8 = arith.constant 0 : index
    %c0_9 = arith.constant 0 : index
    %87 = vector.load %arg4[%c0_8, %c0_9] : memref<1x512xf32, #tpu.memory_space<vmem>>, vector<1x512xf32>
    %88 = vector.broadcast %87 : vector<1x512xf32> to vector<16x512xf32>
    %89 = arith.addf %86, %88 : vector<16x512xf32>
    %cst_10 = arith.constant 0.000000e+00 : f32
    %90 = vector.broadcast %cst_10 : f32 to vector<16x512xf32>
    %91 = arith.maximumf %89, %90 : vector<16x512xf32>
    %92 = arith.truncf %91 : vector<16x512xf32> to vector<16x512xbf16>
    %c0_11 = arith.constant 0 : index
    %c0_12 = arith.constant 0 : index
    %93 = vector.load %arg5[%c0_11, %c0_12] : memref<512x256xbf16, #tpu.memory_space<vmem>>, vector<512x256xbf16>
    %cst_13 = arith.constant dense<0.000000e+00> : vector<16x256xf32>
    %94 = tpu.matmul %92, %93, %cst_13 {dimension_numbers = #tpu.dot_dimension_numbers<[1], [0], [0], [1], [0, 0, 1, 1], [], []>} : vector<16x512xbf16>, vector<512x256xbf16>, vector<16x256xf32> -> vector<16x256xf32>
    %c0_14 = arith.constant 0 : index
    %c0_15 = arith.constant 0 : index
    %95 = vector.load %arg6[%c0_14, %c0_15] : memref<1x256xf32, #tpu.memory_space<vmem>>, vector<1x256xf32>
    %96 = vector.broadcast %95 : vector<1x256xf32> to vector<16x256xf32>
    %97 = arith.addf %94, %96 : vector<16x256xf32>
    %cst_16 = arith.constant 0.000000e+00 : f32
    %98 = vector.broadcast %cst_16 : f32 to vector<16x256xf32>
    %99 = arith.maximumf %97, %98 : vector<16x256xf32>
    %c0_17 = arith.constant 0 : index
    %c0_18 = arith.constant 0 : index
    %100 = vector.load %arg7[%c0_17, %c0_18] : memref<1x256xf32, #tpu.memory_space<vmem>>, vector<1x256xf32>
    %101 = vector.broadcast %100 : vector<1x256xf32> to vector<16x256xf32>
    %102 = arith.mulf %99, %101 : vector<16x256xf32>
    %cst_19 = arith.constant dense<0.000000e+00> : vector<16xf32>
    %103 = vector.multi_reduction <add>, %102, %cst_19 [1] : vector<16x256xf32> to vector<16xf32>
    %104 = vector.shape_cast %103 : vector<16xf32> to vector<16x1xf32>
    %c0_20 = arith.constant 0 : index
    %c0_21 = arith.constant 0 : index
    %105 = memref.load %arg8[%c0_20, %c0_21] : memref<1x1xf32, #tpu.memory_space<smem>>
    %106 = vector.broadcast %105 : f32 to vector<16x1xf32>
    %107 = arith.addf %104, %106 : vector<16x1xf32>
    %c0_22 = arith.constant 0 : index
    %c0_23 = arith.constant 0 : index
    %108 = vector.load %arg9[%c0_22, %c0_23] : memref<16x1xf32, #tpu.memory_space<vmem>>, vector<16x1xf32>
    tpu.vector_store %arg9[%c0_22, %c0_23], %107 {strides = array<i32>} : memref<16x1xf32, #tpu.memory_space<vmem>>, vector<16x1xf32>,
    return
  }
}

</mosaic_0001>

<llo_original>
// kernel: tpu_custom_call.1
$region0: #{tpu_custom_call.1}
  #allocation0 [shape = 'u32[]', space=smem, size = 0x4, offset = 0x4, fixed_abs, tag = 'smem constant byte address 0x4 - core index']
  #allocation1 [shape = 'u32[144,128]{1,0:T(1,128)}', space=vmem, size = 0x12000, scoped, tag = 'internal scratch']
  #allocation2 [shape = 'f32[1,1]{1,0:T(1,128)S(6)}', space=smem, size = 0x200, scoped, tag = 'scoped memory for tpu_custom_call.1']
  %s0 = inlined_call_operand.hbm [shape: bf16[16,784], index: 0, kind: input, shape index: {}]
  %s1 = inlined_call_operand.vmem [shape: s32[16,1], index: 1, kind: input, shape index: {}]
  %s2 = inlined_call_operand.hbm [shape: bf16[784,512], index: 2, kind: input, shape index: {}]
  %s3 = inlined_call_operand.hbm [shape: f32[10,512], index: 3, kind: input, shape index: {}]
  %s4 = inlined_call_operand.vmem [shape: f32[1,512], index: 4, kind: input, shape index: {}]
  %s5 = inlined_call_operand.hbm [shape: bf16[512,256], index: 5, kind: input, shape index: {}]
  %s6 = inlined_call_operand.vmem [shape: f32[1,256], index: 6, kind: input, shape index: {}]
  %s7 = inlined_call_operand.vmem [shape: f32[1,256], index: 7, kind: input, shape index: {}]
  %s8 = inlined_call_operand.<no memory space> [shape: f32[1,1], index: 8, kind: input, shape index: {}]
  %s9 = inlined_call_operand.vmem [shape: f32[16,1], index: 9, kind: output, shape index: {}]
  %s10 = sld [smem:[#allocation0]]
  $region62: #{tpu_custom_call.1} parent=0
    _
  %s12 = ssub.s32 1, %s10
  %s13 = scalar_select 0, %s12, %s10
  %14 = sst [smem:[#allocation2]] %s8
  $region1: #{tpu_custom_call.1} parent=0
    #allocation3 [shape = 'u8[28672]{0}', space=vmem, size = 0x7000, scoped, tag = 'input window, operand 0, single buffered']
    #allocation4 [shape = 's32[1]{0}', space=sflag, size = 0x4, scoped, tag = 'scoped memory for tpu_custom_call.1']
    #allocation5 [shape = 'u8[802816]{0}', space=vmem, size = 0xc4000, scoped, tag = 'input window, operand 2, single buffered']
    #allocation6 [shape = 's32[1]{0}', space=sflag, size = 0x4, scoped, tag = 'scoped memory for tpu_custom_call.1']
    #allocation7 [shape = 'u8[32768]{0}', space=vmem, size = 0x8000, scoped, tag = 'input window, operand 3, single buffered']
    #allocation8 [shape = 'u8[262144]{0}', space=vmem, size = 0x40000, scoped, tag = 'input window, operand 5, single buffered']
    #allocation9 [shape = 's32[1]{0}', space=sflag, size = 0x4, scoped, tag = 'scoped memory for tpu_custom_call.1']
    %15 = vsyncpa [#allocation4], 0
    %16 = vsyncpa [#allocation6], 0
    %17 = vsyncpa [#allocation9], 0
    // Predicated region
    $region2: #{tpu_custom_call.1} parent=1 // pred_check
      _
    $region3: #{tpu_custom_call.1} parent=1 // pred_check_branch
      %19 = sbr.rel (0) target = $region5
    $region4: #{tpu_custom_call.1} parent=1 // pred_region
      %s21 = ssub.s32 896, 896
      %22 = vsyncadd [#allocation4], %s21
      %s23 = sshll.u32 [#allocation3], 4
      %s24 = int_to_ptr.vmem [resolvable:$true] %s23
      %29 = dma.hbm_to_vmem [thread:$0]  %s0, 896, %s24, [#allocation4], 448, 448, 28
    $region5: #{tpu_custom_call.1} parent=1 // pred_fallthru
      _
    // Predicated region
    $region6: #{tpu_custom_call.1} parent=1 // pred_check
      _
    $region7: #{tpu_custom_call.1} parent=1 // pred_check_branch
      %31 = sbr.rel (0) target = $region9
    $region8: #{tpu_custom_call.1} parent=1 // pred_region
      _
    $region9: #{tpu_custom_call.1} parent=1 // pred_fallthru
      _
    // Predicated region
    $region10: #{tpu_custom_call.1} parent=1 // pred_check
      _
    $region11: #{tpu_custom_call.1} parent=1 // pred_check_branch
      %33 = sbr.rel (0) target = $region13
    $region12: #{tpu_custom_call.1} parent=1 // pred_region
      %s35 = ssub.s32 25088, 25088
      %36 = vsyncadd [#allocation6], %s35
      %s37 = sshll.u32 [#allocation5], 4
      %s38 = int_to_ptr.vmem [resolvable:$true] %s37
      %43 = dma.hbm_to_vmem [thread:$0]  %s2, 25088, %s38, [#allocation6], 256, 256, 16
    $region13: #{tpu_custom_call.1} parent=1 // pred_fallthru
      _
    // Predicated region
    $region14: #{tpu_custom_call.1} parent=1 // pred_check
      _
    $region15: #{tpu_custom_call.1} parent=1 // pred_check_branch
      %45 = sbr.rel (0) target = $region17
    $region16: #{tpu_custom_call.1} parent=1 // pred_region
      %s47 = ssub.s32 1024, 1024
      %48 = vsyncadd [#allocation6], %s47
      %s49 = sshll.u32 [#allocation7], 4
      %s50 = int_to_ptr.vmem [resolvable:$true] %s49
      %55 = dma.hbm_to_vmem [thread:$0]  %s3, 1024, %s50, [#allocation6], 512, 512, 32
    $region17: #{tpu_custom_call.1} parent=1 // pred_fallthru
      _
    // Predicated region
    $region18: #{tpu_custom_call.1} parent=1 // pred_check
      _
    $region19: #{tpu_custom_call.1} parent=1 // pred_check_branch
      %57 = sbr.rel (0) target = $region21
    $region20: #{tpu_custom_call.1} parent=1 // pred_region
      _
    $region21: #{tpu_custom_call.1} parent=1 // pred_fallthru
      _
    // Predicated region
    $region22: #{tpu_custom_call.1} parent=1 // pred_check
      _
    $region23: #{tpu_custom_call.1} parent=1 // pred_check_branch
      %59 = sbr.rel (0) target = $region25
    $region24: #{tpu_custom_call.1} parent=1 // pred_region
      %s61 = ssub.s32 8192, 8192
      %62 = vsyncadd [#allocation9], %s61
      %s63 = sshll.u32 [#allocation8], 4
      %s64 = int_to_ptr.vmem [resolvable:$true] %s63
      %69 = dma.hbm_to_vmem [thread:$0]  %s5, 8192, %s64, [#allocation9], 128, 128, 8
    $region25: #{tpu_custom_call.1} parent=1 // pred_fallthru
      _
    // Predicated region
    $region26: #{tpu_custom_call.1} parent=1 // pred_check
      _
    $region27: #{tpu_custom_call.1} parent=1 // pred_check_branch
      %71 = sbr.rel (0) target = $region29
    $region28: #{tpu_custom_call.1} parent=1 // pred_region
      _
    $region29: #{tpu_custom_call.1} parent=1 // pred_fallthru
      _
    // Predicated region
    $region30: #{tpu_custom_call.1} parent=1 // pred_check
      _
    $region31: #{tpu_custom_call.1} parent=1 // pred_check_branch
      %73 = sbr.rel (0) target = $region33
    $region32: #{tpu_custom_call.1} parent=1 // pred_region
      _
    $region33: #{tpu_custom_call.1} parent=1 // pred_fallthru
      _
    // Predicated region
    $region34: #{tpu_custom_call.1} parent=1 // pred_check
      _
    $region35: #{tpu_custom_call.1} parent=1 // pred_check_branch
      %75 = sbr.rel (0) target = $region37
    $region36: #{tpu_custom_call.1} parent=1 // pred_region
      _
    $region37: #{tpu_custom_call.1} parent=1 // pred_fallthru
      _
    // Predicated region
    $region38: #{tpu_custom_call.1} parent=1 // pred_check
      _
    $region39: #{tpu_custom_call.1} parent=1 // pred_check_branch
      %77 = sbr.rel (0) target = $region41
    $region40: #{tpu_custom_call.1} parent=1 // pred_region
      %78 = dma.done [#allocation4], 896
    $region41: #{tpu_custom_call.1} parent=1 // pred_fallthru
      _
    // Predicated region
    $region42: #{tpu_custom_call.1} parent=1 // pred_check
      _
    $region43: #{tpu_custom_call.1} parent=1 // pred_check_branch
      %80 = sbr.rel (0) target = $region45
    $region44: #{tpu_custom_call.1} parent=1 // pred_region
      %81 = dma.done [#allocation6], 25088
    $region45: #{tpu_custom_call.1} parent=1 // pred_fallthru
      _
    // Predicated region
    $region46: #{tpu_custom_call.1} parent=1 // pred_check
      _
    $region47: #{tpu_custom_call.1} parent=1 // pred_check_branch
      %83 = sbr.rel (0) target = $region49
    $region48: #{tpu_custom_call.1} parent=1 // pred_region
      %84 = dma.done [#allocation6], 1024
    $region49: #{tpu_custom_call.1} parent=1 // pred_fallthru
      _
    // Predicated region
    $region50: #{tpu_custom_call.1} parent=1 // pred_check
      _
    $region51: #{tpu_custom_call.1} parent=1 // pred_check_branch
      %86 = sbr.rel (0) target = $region53
    $region52: #{tpu_custom_call.1} parent=1 // pred_region
      %87 = dma.done [#allocation9], 8192
    $region53: #{tpu_custom_call.1} parent=1 // pred_fallthru
      _
    %v89 = vld [vmem:[#allocation3] sm:$0xff]
    %v90 = vld [vmem:[#allocation3 + $0x8] sm:$0xff]
    %v91 = vld [vmem:[#allocation3 + $0x10] sm:$0xff]
    %v92 = vld [vmem:[#allocation3 + $0x18] sm:$0xf]
    %v93 = vld [vmem:[#allocation3 + $0x1c] sm:$0xff]
    %v94 = vld [vmem:[#allocation3 + $0x24] sm:$0xff]
    %v95 = vld [vmem:[#allocation3 + $0x2c] sm:$0xff]
    %v96 = vld [vmem:[#allocation3 + $0x34] sm:$0xf]
    %v97 = vld [vmem:[#allocation5] sm:$0xff]
    %v98 = vld [vmem:[#allocation5 + $0x8] sm:$0xff]
    %v99 = vld [vmem:[#allocation5 + $0x10] sm:$0xff]
    %v100 = vld [vmem:[#allocation5 + $0x18] sm:$0xff]
    %v101 = vld [vmem:[#allocation5 + $0x20] sm:$0xff]
    %v102 = vld [vmem:[#allocation5 + $0x28] sm:$0xff]
    %v103 = vld [vmem:[#allocation5 + $0x30] sm:$0xff]
    %v104 = vld [vmem:[#allocation5 + $0x38] sm:$0xff]
    %v105 = vld [vmem:[#allocation5 + $0x40] sm:$0xff]
    %v106 = vld [vmem:[#allocation5 + $0x48] sm:$0xff]
    %v107 = vld [vmem:[#allocation5 + $0x50] sm:$0xff]
    %v108 = vld [vmem:[#allocation5 + $0x58] sm:$0xff]
    %v109 = vld [vmem:[#allocation5 + $0x60] sm:$0xff]
    %v110 = vld [vmem:[#allocation5 + $0x68] sm:$0xff]
    %v111 = vld [vmem:[#allocation5 + $0x70] sm:$0xff]
    %v112 = vld [vmem:[#allocation5 + $0x78] sm:$0xff]
    %v113 = vld [vmem:[#allocation5 + $0x80] sm:$0xff]
    %v114 = vld [vmem:[#allocation5 + $0x88] sm:$0xff]
    %v115 = vld [vmem:[#allocation5 + $0x90] sm:$0xff]
    %v116 = vld [vmem:[#allocation5 + $0x98] sm:$0xff]
    %v117 = vld [vmem:[#allocation5 + $0xa0] sm:$0xff]
    %v118 = vld [vmem:[#allocation5 + $0xa8] sm:$0xff]
    %v119 = vld [vmem:[#allocation5 + $0xb0] sm:$0xff]
    %v120 = vld [vmem:[#allocation5 + $0xb8] sm:$0xff]
    %v121 = vld [vmem:[#allocation5 + $0xc0] sm:$0xff]
    %v122 = vld [vmem:[#allocation5 + $0xc8] sm:$0xff]
    %v123 = vld [vmem:[#allocation5 + $0xd0] sm:$0xff]
    %v124 = vld [vmem:[#allocation5 + $0xd8] sm:$0xff]
    %v125 = vld [vmem:[#allocation5 + $0xe0] sm:$0xff]
    %v126 = vld [vmem:[#allocation5 + $0xe8] sm:$0xff]
    %v127 = vld [vmem:[#allocation5 + $0xf0] sm:$0xff]
    %v128 = vld [vmem:[#allocation5 + $0xf8] sm:$0xff]
    %v129 = vld [vmem:[#allocation5 + $0x100] sm:$0xff]
    %v130 = vld [vmem:[#allocation5 + $0x108] sm:$0xff]
    %v131 = vld [vmem:[#allocation5 + $0x110] sm:$0xff]
    %v132 = vld [vmem:[#allocation5 + $0x118] sm:$0xff]
    %v133 = vld [vmem:[#allocation5 + $0x120] sm:$0xff]
    %v134 = vld [vmem:[#allocation5 + $0x128] sm:$0xff]
    %v135 = vld [vmem:[#allocation5 + $0x130] sm:$0xff]
    %v136 = vld [vmem:[#allocation5 + $0x138] sm:$0xff]
    %v137 = vld [vmem:[#allocation5 + $0x140] sm:$0xff]
    %v138 = vld [vmem:[#allocation5 + $0x148] sm:$0xff]
    %v139 = vld [vmem:[#allocation5 + $0x150] sm:$0xff]
    %v140 = vld [vmem:[#allocation5 + $0x158] sm:$0xff]
    %v141 = vld [vmem:[#allocation5 + $0x160] sm:$0xff]
    %v142 = vld [vmem:[#allocation5 + $0x168] sm:$0xff]
    %v143 = vld [vmem:[#allocation5 + $0x170] sm:$0xff]
    %v144 = vld [vmem:[#allocation5 + $0x178] sm:$0xff]
    %v145 = vld [vmem:[#allocation5 + $0x180] sm:$0xff]
    %v146 = vld [vmem:[#allocation5 + $0x188] sm:$0xff]
    %v147 = vld [vmem:[#allocation5 + $0x190] sm:$0xff]
    %v148 = vld [vmem:[#allocation5 + $0x198] sm:$0xff]
    %v149 = vld [vmem:[#allocation5 + $0x1a0] sm:$0xff]
    %v150 = vld [vmem:[#allocation5 + $0x1a8] sm:$0xff]
    %v151 = vld [vmem:[#allocation5 + $0x1b0] sm:$0xff]
    %v152 = vld [vmem:[#allocation5 + $0x1b8] sm:$0xff]
    %v153 = vld [vmem:[#allocation5 + $0x1c0] sm:$0xff]
    %v154 = vld [vmem:[#allocation5 + $0x1c8] sm:$0xff]
    %v155 = vld [vmem:[#allocation5 + $0x1d0] sm:$0xff]
    %v156 = vld [vmem:[#allocation5 + $0x1d8] sm:$0xff]
    %v157 = vld [vmem:[#allocation5 + $0x1e0] sm:$0xff]
    %v158 = vld [vmem:[#allocation5 + $0x1e8] sm:$0xff]
    %v159 = vld [vmem:[#allocation5 + $0x1f0] sm:$0xff]
    %v160 = vld [vmem:[#allocation5 + $0x1f8] sm:$0xff]
    %v161 = vld [vmem:[#allocation5 + $0x200] sm:$0xff]
    %v162 = vld [vmem:[#allocation5 + $0x208] sm:$0xff]
    %v163 = vld [vmem:[#allocation5 + $0x210] sm:$0xff]
    %v164 = vld [vmem:[#allocation5 + $0x218] sm:$0xff]
    %v165 = vld [vmem:[#allocation5 + $0x220] sm:$0xff]
    %v166 = vld [vmem:[#allocation5 + $0x228] sm:$0xff]
    %v167 = vld [vmem:[#allocation5 + $0x230] sm:$0xff]
    %v168 = vld [vmem:[#allocation5 + $0x238] sm:$0xff]
    %v169 = vld [vmem:[#allocation5 + $0x240] sm:$0xff]
    %v170 = vld [vmem:[#allocation5 + $0x248] sm:$0xff]
    %v171 = vld [vmem:[#allocation5 + $0x250] sm:$0xff]
    %v172 = vld [vmem:[#allocation5 + $0x258] sm:$0xff]
    %v173 = vld [vmem:[#allocation5 + $0x260] sm:$0xff]
    %v174 = vld [vmem:[#allocation5 + $0x268] sm:$0xff]
    %v175 = vld [vmem:[#allocation5 + $0x270] sm:$0xff]
    %v176 = vld [vmem:[#allocation5 + $0x278] sm:$0xff]
    %v177 = vld [vmem:[#allocation5 + $0x280] sm:$0xff]
    %v178 = vld [vmem:[#allocation5 + $0x288] sm:$0xff]
    %v179 = vld [vmem:[#allocation5 + $0x290] sm:$0xff]
    %v180 = vld [vmem:[#allocation5 + $0x298] sm:$0xff]
    %v181 = vld [vmem:[#allocation5 + $0x2a0] sm:$0xff]
    %v182 = vld [vmem:[#allocation5 + $0x2a8] sm:$0xff]
    %v183 = vld [vmem:[#allocation5 + $0x2b0] sm:$0xff]
    %v184 = vld [vmem:[#allocation5 + $0x2b8] sm:$0xff]
    %v185 = vld [vmem:[#allocation5 + $0x2c0] sm:$0xff]
    %v186 = vld [vmem:[#allocation5 + $0x2c8] sm:$0xff]
    %v187 = vld [vmem:[#allocation5 + $0x2d0] sm:$0xff]
    %v188 = vld [vmem:[#allocation5 + $0x2d8] sm:$0xff]
    %v189 = vld [vmem:[#allocation5 + $0x2e0] sm:$0xff]
    %v190 = vld [vmem:[#allocation5 + $0x2e8] sm:$0xff]
    %v191 = vld [vmem:[#allocation5 + $0x2f0] sm:$0xff]
    %v192 = vld [vmem:[#allocation5 + $0x2f8] sm:$0xff]
    %v193 = vld [vmem:[#allocation5 + $0x300] sm:$0xff]
    %v194 = vld [vmem:[#allocation5 + $0x308] sm:$0xff]
    %v195 = vld [vmem:[#allocation5 + $0x310] sm:$0xff]
    %v196 = vld [vmem:[#allocation5 + $0x318] sm:$0xff]
    %v197 = vld [vmem:[#allocation5 + $0x320] sm:$0xff]
    %v198 = vld [vmem:[#allocation5 + $0x328] sm:$0xff]
    %v199 = vld [vmem:[#allocation5 + $0x330] sm:$0xff]
    %v200 = vld [vmem:[#allocation5 + $0x338] sm:$0xff]
    %v201 = vld [vmem:[#allocation5 + $0x340] sm:$0xff]
    %v202 = vld [vmem:[#allocation5 + $0x348] sm:$0xff]
    %v203 = vld [vmem:[#allocation5 + $0x350] sm:$0xff]
    %v204 = vld [vmem:[#allocation5 + $0x358] sm:$0xff]
    %v205 = vld [vmem:[#allocation5 + $0x360] sm:$0xff]
    %v206 = vld [vmem:[#allocation5 + $0x368] sm:$0xff]
    %v207 = vld [vmem:[#allocation5 + $0x370] sm:$0xff]
    %v208 = vld [vmem:[#allocation5 + $0x378] sm:$0xff]
    %v209 = vld [vmem:[#allocation5 + $0x380] sm:$0xff]
    %v210 = vld [vmem:[#allocation5 + $0x388] sm:$0xff]
    %v211 = vld [vmem:[#allocation5 + $0x390] sm:$0xff]
    %v212 = vld [vmem:[#allocation5 + $0x398] sm:$0xff]
    %v213 = vld [vmem:[#allocation5 + $0x3a0] sm:$0xff]
    %v214 = vld [vmem:[#allocation5 + $0x3a8] sm:$0xff]
    %v215 = vld [vmem:[#allocation5 + $0x3b0] sm:$0xff]
    %v216 = vld [vmem:[#allocation5 + $0x3b8] sm:$0xff]
    %v217 = vld [vmem:[#allocation5 + $0x3c0] sm:$0xff]
    %v218 = vld [vmem:[#allocation5 + $0x3c8] sm:$0xff]
    %v219 = vld [vmem:[#allocation5 + $0x3d0] sm:$0xff]
    %v220 = vld [vmem:[#allocation5 + $0x3d8] sm:$0xff]
    %v221 = vld [vmem:[#allocation5 + $0x3e0] sm:$0xff]
    %v222 = vld [vmem:[#allocation5 + $0x3e8] sm:$0xff]
    %v223 = vld [vmem:[#allocation5 + $0x3f0] sm:$0xff]
    %v224 = vld [vmem:[#allocation5 + $0x3f8] sm:$0xff]
    %v225 = vld [vmem:[#allocation5 + $0x400] sm:$0xff]
    %v226 = vld [vmem:[#allocation5 + $0x408] sm:$0xff]
    %v227 = vld [vmem:[#allocation5 + $0x410] sm:$0xff]
    %v228 = vld [vmem:[#allocation5 + $0x418] sm:$0xff]
    %v229 = vld [vmem:[#allocation5 + $0x420] sm:$0xff]
    %v230 = vld [vmem:[#allocation5 + $0x428] sm:$0xff]
    %v231 = vld [vmem:[#allocation5 + $0x430] sm:$0xff]
    %v232 = vld [vmem:[#allocation5 + $0x438] sm:$0xff]
    %v233 = vld [vmem:[#allocation5 + $0x440] sm:$0xff]
    %v234 = vld [vmem:[#allocation5 + $0x448] sm:$0xff]
    %v235 = vld [vmem:[#allocation5 + $0x450] sm:$0xff]
    %v236 = vld [vmem:[#allocation5 + $0x458] sm:$0xff]
    %v237 = vld [vmem:[#allocation5 + $0x460] sm:$0xff]
    %v238 = vld [vmem:[#allocation5 + $0x468] sm:$0xff]
    %v239 = vld [vmem:[#allocation5 + $0x470] sm:$0xff]
    %v240 = vld [vmem:[#allocation5 + $0x478] sm:$0xff]
    %v241 = vld [vmem:[#allocation5 + $0x480] sm:$0xff]
    %v242 = vld [vmem:[#allocation5 + $0x488] sm:$0xff]
    %v243 = vld [vmem:[#allocation5 + $0x490] sm:$0xff]
    %v244 = vld [vmem:[#allocation5 + $0x498] sm:$0xff]
    %v245 = vld [vmem:[#allocation5 + $0x4a0] sm:$0xff]
    %v246 = vld [vmem:[#allocation5 + $0x4a8] sm:$0xff]
    %v247 = vld [vmem:[#allocation5 + $0x4b0] sm:$0xff]
    %v248 = vld [vmem:[#allocation5 + $0x4b8] sm:$0xff]
    %v249 = vld [vmem:[#allocation5 + $0x4c0] sm:$0xff]
    %v250 = vld [vmem:[#allocation5 + $0x4c8] sm:$0xff]
    %v251 = vld [vmem:[#allocation5 + $0x4d0] sm:$0xff]
    %v252 = vld [vmem:[#allocation5 + $0x4d8] sm:$0xff]
    %v253 = vld [vmem:[#allocation5 + $0x4e0] sm:$0xff]
    %v254 = vld [vmem:[#allocation5 + $0x4e8] sm:$0xff]
    %v255 = vld [vmem:[#allocation5 + $0x4f0] sm:$0xff]
    %v256 = vld [vmem:[#allocation5 + $0x4f8] sm:$0xff]
    %v257 = vld [vmem:[#allocation5 + $0x500] sm:$0xff]
    %v258 = vld [vmem:[#allocation5 + $0x508] sm:$0xff]
    %v259 = vld [vmem:[#allocation5 + $0x510] sm:$0xff]
    %v260 = vld [vmem:[#allocation5 + $0x518] sm:$0xff]
    %v261 = vld [vmem:[#allocation5 + $0x520] sm:$0xff]
    %v262 = vld [vmem:[#allocation5 + $0x528] sm:$0xff]
    %v263 = vld [vmem:[#allocation5 + $0x530] sm:$0xff]
    %v264 = vld [vmem:[#allocation5 + $0x538] sm:$0xff]
    %v265 = vld [vmem:[#allocation5 + $0x540] sm:$0xff]
    %v266 = vld [vmem:[#allocation5 + $0x548] sm:$0xff]
    %v267 = vld [vmem:[#allocation5 + $0x550] sm:$0xff]
    %v268 = vld [vmem:[#allocation5 + $0x558] sm:$0xff]
    %v269 = vld [vmem:[#allocation5 + $0x560] sm:$0xff]
    %v270 = vld [vmem:[#allocation5 + $0x568] sm:$0xff]
    %v271 = vld [vmem:[#allocation5 + $0x570] sm:$0xff]
    %v272 = vld [vmem:[#allocation5 + $0x578] sm:$0xff]
    %v273 = vld [vmem:[#allocation5 + $0x580] sm:$0xff]
    %v274 = vld [vmem:[#allocation5 + $0x588] sm:$0xff]
    %v275 = vld [vmem:[#allocation5 + $0x590] sm:$0xff]
    %v276 = vld [vmem:[#allocation5 + $0x598] sm:$0xff]
    %v277 = vld [vmem:[#allocation5 + $0x5a0] sm:$0xff]
    %v278 = vld [vmem:[#allocation5 + $0x5a8] sm:$0xff]
    %v279 = vld [vmem:[#allocation5 + $0x5b0] sm:$0xff]
    %v280 = vld [vmem:[#allocation5 + $0x5b8] sm:$0xff]
    %v281 = vld [vmem:[#allocation5 + $0x5c0] sm:$0xff]
    %v282 = vld [vmem:[#allocation5 + $0x5c8] sm:$0xff]
    %v283 = vld [vmem:[#allocation5 + $0x5d0] sm:$0xff]
    %v284 = vld [vmem:[#allocation5 + $0x5d8] sm:$0xff]
    %v285 = vld [vmem:[#allocation5 + $0x5e0] sm:$0xff]
    %v286 = vld [vmem:[#allocation5 + $0x5e8] sm:$0xff]
    %v287 = vld [vmem:[#allocation5 + $0x5f0] sm:$0xff]
    %v288 = vld [vmem:[#allocation5 + $0x5f8] sm:$0xff]
    %v289 = vld [vmem:[#allocation5 + $0x600] sm:$0xff]
    %v290 = vld [vmem:[#allocation5 + $0x608] sm:$0xff]
    %v291 = vld [vmem:[#allocation5 + $0x610] sm:$0xff]
    %v292 = vld [vmem:[#allocation5 + $0x618] sm:$0xff]
    %v293 = vld [vmem:[%s1] sm:$0xff]
    %v294 = vld [vmem:[%s1 + $0x8] sm:$0xff]
    %v295 = vld [vmem:[#allocation7] sm:$0xff]
    %v296 = vld [vmem:[#allocation7 + $0x8] sm:$0xff]
    %v297 = vld [vmem:[#allocation7 + $0x10] sm:$0xff]
    %v298 = vld [vmem:[#allocation7 + $0x18] sm:$0xff]
    %v299 = vld [vmem:[#allocation7 + $0x20] sm:$0x3]
    %v300 = vld [vmem:[#allocation7 + $0x28] sm:$0x3]
    %v301 = vld [vmem:[#allocation7 + $0x30] sm:$0x3]
    %v302 = vld [vmem:[#allocation7 + $0x38] sm:$0x3]
    %vm303 = vcmp.eq.s32.totalorder %v293, 0
    %vm304 = vcmp.eq.s32.totalorder %v294, 0
    %v305 = vsel %vm303, 1, 0
    %v306 = vsel %vm304, 1, 0
    %307 = vset.pattern.permute.xlu0 0
    %308 = vperm.xlu0 %307, %v305
    %v309 = vpop.permute.xlu0 %308
    %310 = vset.pattern.permute.xlu0 0
    %311 = vperm.xlu0 %310, %v306
    %v312 = vpop.permute.xlu0 %311
    %vm313 = vcmp.eq.s32.totalorder %v309, 1
    %vm314 = vcmp.eq.s32.totalorder %v312, 1
    %v315 = vlaneseq
    %v316 = vshrl.u32 %v315, 7
    %v317 = vsub.s32 0, %v316
    %v318 = vrot.slane %v295, %v317
    %v319 = vlaneseq
    %v320 = vshrl.u32 %v319, 7
    %v321 = vsub.s32 0, %v320
    %v322 = vrot.slane %v296, %v321
    %v323 = vlaneseq
    %v324 = vshrl.u32 %v323, 7
    %v325 = vsub.s32 0, %v324
    %v326 = vrot.slane %v297, %v325
    %v327 = vlaneseq
    %v328 = vshrl.u32 %v327, 7
    %v329 = vsub.s32 0, %v328
    %v330 = vrot.slane %v298, %v329
    %v331 = vsel %vm313, %v318, 0.0
    %v332 = vsel %vm313, %v322, 0.0
    %v333 = vsel %vm313, %v326, 0.0
    %v334 = vsel %vm313, %v330, 0.0
    %v335 = vsel %vm314, %v318, 0.0
    %v336 = vsel %vm314, %v322, 0.0
    %v337 = vsel %vm314, %v326, 0.0
    %v338 = vsel %vm314, %v330, 0.0
    %vm339 = vcmp.eq.s32.totalorder %v293, 1
    %vm340 = vcmp.eq.s32.totalorder %v294, 1
    %v341 = vsel %vm339, 1, 0
    %v342 = vsel %vm340, 1, 0
    %343 = vset.pattern.permute.xlu0 0
    %344 = vperm.xlu0 %343, %v341
    %v345 = vpop.permute.xlu0 %344
    %346 = vset.pattern.permute.xlu0 0
    %347 = vperm.xlu0 %346, %v342
    %v348 = vpop.permute.xlu0 %347
    %vm349 = vcmp.eq.s32.totalorder %v345, 1
    %vm350 = vcmp.eq.s32.totalorder %v348, 1
    %v351 = vlaneseq
    %v352 = vshrl.u32 %v351, 7
    %v353 = vsub.s32 1, %v352
    %v354 = vrot.slane %v295, %v353
    %v355 = vlaneseq
    %v356 = vshrl.u32 %v355, 7
    %v357 = vsub.s32 1, %v356
    %v358 = vrot.slane %v296, %v357
    %v359 = vlaneseq
    %v360 = vshrl.u32 %v359, 7
    %v361 = vsub.s32 1, %v360
    %v362 = vrot.slane %v297, %v361
    %v363 = vlaneseq
    %v364 = vshrl.u32 %v363, 7
    %v365 = vsub.s32 1, %v364
    %v366 = vrot.slane %v298, %v365
    %v367 = vsel %vm349, %v354, %v331
    %v368 = vsel %vm349, %v358, %v332
    %v369 = vsel %vm349, %v362, %v333
    %v370 = vsel %vm349, %v366, %v334
    %v371 = vsel %vm350, %v354, %v335
    %v372 = vsel %vm350, %v358, %v336
    %v373 = vsel %vm350, %v362, %v337
    %v374 = vsel %vm350, %v366, %v338
    %vm375 = vcmp.eq.s32.totalorder %v293, 2
    %vm376 = vcmp.eq.s32.totalorder %v294, 2
    %v377 = vsel %vm375, 1, 0
    %v378 = vsel %vm376, 1, 0
    %379 = vset.pattern.permute.xlu0 0
    %380 = vperm.xlu0 %379, %v377
    %v381 = vpop.permute.xlu0 %380
    %382 = vset.pattern.permute.xlu0 0
    %383 = vperm.xlu0 %382, %v378
    %v384 = vpop.permute.xlu0 %383
    %vm385 = vcmp.eq.s32.totalorder %v381, 1
    %vm386 = vcmp.eq.s32.totalorder %v384, 1
    %v387 = vlaneseq
    %v388 = vshrl.u32 %v387, 7
    %v389 = vsub.s32 2, %v388
    %v390 = vrot.slane %v295, %v389
    %v391 = vlaneseq
    %v392 = vshrl.u32 %v391, 7
    %v393 = vsub.s32 2, %v392
    %v394 = vrot.slane %v296, %v393
    %v395 = vlaneseq
    %v396 = vshrl.u32 %v395, 7
    %v397 = vsub.s32 2, %v396
    %v398 = vrot.slane %v297, %v397
    %v399 = vlaneseq
    %v400 = vshrl.u32 %v399, 7
    %v401 = vsub.s32 2, %v400
    %v402 = vrot.slane %v298, %v401
    %v403 = vsel %vm385, %v390, %v367
    %v404 = vsel %vm385, %v394, %v368
    %v405 = vsel %vm385, %v398, %v369
    %v406 = vsel %vm385, %v402, %v370
    %v407 = vsel %vm386, %v390, %v371
    %v408 = vsel %vm386, %v394, %v372
    %v409 = vsel %vm386, %v398, %v373
    %v410 = vsel %vm386, %v402, %v374
    %vm411 = vcmp.eq.s32.totalorder %v293, 3
    %vm412 = vcmp.eq.s32.totalorder %v294, 3
    %v413 = vsel %vm411, 1, 0
    %v414 = vsel %vm412, 1, 0
    %415 = vset.pattern.permute.xlu0 0
    %416 = vperm.xlu0 %415, %v413
    %v417 = vpop.permute.xlu0 %416
    %418 = vset.pattern.permute.xlu0 0
    %419 = vperm.xlu0 %418, %v414
    %v420 = vpop.permute.xlu0 %419
    %vm421 = vcmp.eq.s32.totalorder %v417, 1
    %vm422 = vcmp.eq.s32.totalorder %v420, 1
    %v423 = vlaneseq
    %v424 = vshrl.u32 %v423, 7
    %v425 = vsub.s32 3, %v424
    %v426 = vrot.slane %v295, %v425
    %v427 = vlaneseq
    %v428 = vshrl.u32 %v427, 7
    %v429 = vsub.s32 3, %v428
    %v430 = vrot.slane %v296, %v429
    %v431 = vlaneseq
    %v432 = vshrl.u32 %v431, 7
    %v433 = vsub.s32 3, %v432
    %v434 = vrot.slane %v297, %v433
    %v435 = vlaneseq
    %v436 = vshrl.u32 %v435, 7
    %v437 = vsub.s32 3, %v436
    %v438 = vrot.slane %v298, %v437
    %v439 = vsel %vm421, %v426, %v403
    %v440 = vsel %vm421, %v430, %v404
    %v441 = vsel %vm421, %v434, %v405
    %v442 = vsel %vm421, %v438, %v406
    %v443 = vsel %vm422, %v426, %v407
    %v444 = vsel %vm422, %v430, %v408
    %v445 = vsel %vm422, %v434, %v409
    %v446 = vsel %vm422, %v438, %v410
    %vm447 = vcmp.eq.s32.totalorder %v293, 4
    %vm448 = vcmp.eq.s32.totalorder %v294, 4
    %v449 = vsel %vm447, 1, 0
    %v450 = vsel %vm448, 1, 0
    %451 = vset.pattern.permute.xlu0 0
    %452 = vperm.xlu0 %451, %v449
    %v453 = vpop.permute.xlu0 %452
    %454 = vset.pattern.permute.xlu0 0
    %455 = vperm.xlu0 %454, %v450
    %v456 = vpop.permute.xlu0 %455
    %vm457 = vcmp.eq.s32.totalorder %v453, 1
    %vm458 = vcmp.eq.s32.totalorder %v456, 1
    %v459 = vlaneseq
    %v460 = vshrl.u32 %v459, 7
    %v461 = vsub.s32 4, %v460
    %v462 = vrot.slane %v295, %v461
    %v463 = vlaneseq
    %v464 = vshrl.u32 %v463, 7
    %v465 = vsub.s32 4, %v464
    %v466 = vrot.slane %v296, %v465
    %v467 = vlaneseq
    %v468 = vshrl.u32 %v467, 7
    %v469 = vsub.s32 4, %v468
    %v470 = vrot.slane %v297, %v469
    %v471 = vlaneseq
    %v472 = vshrl.u32 %v471, 7
    %v473 = vsub.s32 4, %v472
    %v474 = vrot.slane %v298, %v473
    %v475 = vsel %vm457, %v462, %v439
    %v476 = vsel %vm457, %v466, %v440
    %v477 = vsel %vm457, %v470, %v441
    %v478 = vsel %vm457, %v474, %v442
    %v479 = vsel %vm458, %v462, %v443
    %v480 = vsel %vm458, %v466, %v444
    %v481 = vsel %vm458, %v470, %v445
    %v482 = vsel %vm458, %v474, %v446
    %vm483 = vcmp.eq.s32.totalorder %v293, 5
    %vm484 = vcmp.eq.s32.totalorder %v294, 5
    %v485 = vsel %vm483, 1, 0
    %v486 = vsel %vm484, 1, 0
    %487 = vset.pattern.permute.xlu0 0
    %488 = vperm.xlu0 %487, %v485
    %v489 = vpop.permute.xlu0 %488
    %490 = vset.pattern.permute.xlu0 0
    %491 = vperm.xlu0 %490, %v486
    %v492 = vpop.permute.xlu0 %491
    %vm493 = vcmp.eq.s32.totalorder %v489, 1
    %vm494 = vcmp.eq.s32.totalorder %v492, 1
    %v495 = vlaneseq
    %v496 = vshrl.u32 %v495, 7
    %v497 = vsub.s32 5, %v496
    %v498 = vrot.slane %v295, %v497
    %v499 = vlaneseq
    %v500 = vshrl.u32 %v499, 7
    %v501 = vsub.s32 5, %v500
    %v502 = vrot.slane %v296, %v501
    %v503 = vlaneseq
    %v504 = vshrl.u32 %v503, 7
    %v505 = vsub.s32 5, %v504
    %v506 = vrot.slane %v297, %v505
    %v507 = vlaneseq
    %v508 = vshrl.u32 %v507, 7
    %v509 = vsub.s32 5, %v508
    %v510 = vrot.slane %v298, %v509
    %v511 = vsel %vm493, %v498, %v475
    %v512 = vsel %vm493, %v502, %v476
    %v513 = vsel %vm493, %v506, %v477
    %v514 = vsel %vm493, %v510, %v478
    %v515 = vsel %vm494, %v498, %v479
    %v516 = vsel %vm494, %v502, %v480
    %v517 = vsel %vm494, %v506, %v481
    %v518 = vsel %vm494, %v510, %v482
    %vm519 = vcmp.eq.s32.totalorder %v293, 6
    %vm520 = vcmp.eq.s32.totalorder %v294, 6
    %v521 = vsel %vm519, 1, 0
    %v522 = vsel %vm520, 1, 0
    %523 = vset.pattern.permute.xlu0 0
    %524 = vperm.xlu0 %523, %v521
    %v525 = vpop.permute.xlu0 %524
    %526 = vset.pattern.permute.xlu0 0
    %527 = vperm.xlu0 %526, %v522
    %v528 = vpop.permute.xlu0 %527
    %vm529 = vcmp.eq.s32.totalorder %v525, 1
    %vm530 = vcmp.eq.s32.totalorder %v528, 1
    %v531 = vlaneseq
    %v532 = vshrl.u32 %v531, 7
    %v533 = vsub.s32 6, %v532
    %v534 = vrot.slane %v295, %v533
    %v535 = vlaneseq
    %v536 = vshrl.u32 %v535, 7
    %v537 = vsub.s32 6, %v536
    %v538 = vrot.slane %v296, %v537
    %v539 = vlaneseq
    %v540 = vshrl.u32 %v539, 7
    %v541 = vsub.s32 6, %v540
    %v542 = vrot.slane %v297, %v541
    %v543 = vlaneseq
    %v544 = vshrl.u32 %v543, 7
    %v545 = vsub.s32 6, %v544
    %v546 = vrot.slane %v298, %v545
    %v547 = vsel %vm529, %v534, %v511
    %v548 = vsel %vm529, %v538, %v512
    %v549 = vsel %vm529, %v542, %v513
    %v550 = vsel %vm529, %v546, %v514
    %v551 = vsel %vm530, %v534, %v515
    %v552 = vsel %vm530, %v538, %v516
    %v553 = vsel %vm530, %v542, %v517
    %v554 = vsel %vm530, %v546, %v518
    %vm555 = vcmp.eq.s32.totalorder %v293, 7
    %vm556 = vcmp.eq.s32.totalorder %v294, 7
    %v557 = vsel %vm555, 1, 0
    %v558 = vsel %vm556, 1, 0
    %559 = vset.pattern.permute.xlu0 0
    %560 = vperm.xlu0 %559, %v557
    %v561 = vpop.permute.xlu0 %560
    %562 = vset.pattern.permute.xlu0 0
    %563 = vperm.xlu0 %562, %v558
    %v564 = vpop.permute.xlu0 %563
    %vm565 = vcmp.eq.s32.totalorder %v561, 1
    %vm566 = vcmp.eq.s32.totalorder %v564, 1
    %v567 = vlaneseq
    %v568 = vshrl.u32 %v567, 7
    %v569 = vsub.s32 7, %v568
    %v570 = vrot.slane %v295, %v569
    %v571 = vlaneseq
    %v572 = vshrl.u32 %v571, 7
    %v573 = vsub.s32 7, %v572
    %v574 = vrot.slane %v296, %v573
    %v575 = vlaneseq
    %v576 = vshrl.u32 %v575, 7
    %v577 = vsub.s32 7, %v576
    %v578 = vrot.slane %v297, %v577
    %v579 = vlaneseq
    %v580 = vshrl.u32 %v579, 7
    %v581 = vsub.s32 7, %v580
    %v582 = vrot.slane %v298, %v581
    %v583 = vsel %vm565, %v570, %v547
    %v584 = vsel %vm565, %v574, %v548
    %v585 = vsel %vm565, %v578, %v549
    %v586 = vsel %vm565, %v582, %v550
    %v587 = vsel %vm566, %v570, %v551
    %v588 = vsel %vm566, %v574, %v552
    %v589 = vsel %vm566, %v578, %v553
    %v590 = vsel %vm566, %v582, %v554
    %vm591 = vcmp.eq.s32.totalorder %v293, 8
    %vm592 = vcmp.eq.s32.totalorder %v294, 8
    %v593 = vsel %vm591, 1, 0
    %v594 = vsel %vm592, 1, 0
    %595 = vset.pattern.permute.xlu0 0
    %596 = vperm.xlu0 %595, %v593
    %v597 = vpop.permute.xlu0 %596
    %598 = vset.pattern.permute.xlu0 0
    %599 = vperm.xlu0 %598, %v594
    %v600 = vpop.permute.xlu0 %599
    %vm601 = vcmp.eq.s32.totalorder %v597, 1
    %vm602 = vcmp.eq.s32.totalorder %v600, 1
    %v603 = vlaneseq
    %v604 = vshrl.u32 %v603, 7
    %v605 = vsub.s32 0, %v604
    %v606 = vrot.slane %v299, %v605
    %v607 = vlaneseq
    %v608 = vshrl.u32 %v607, 7
    %v609 = vsub.s32 0, %v608
    %v610 = vrot.slane %v300, %v609
    %v611 = vlaneseq
    %v612 = vshrl.u32 %v611, 7
    %v613 = vsub.s32 0, %v612
    %v614 = vrot.slane %v301, %v613
    %v615 = vlaneseq
    %v616 = vshrl.u32 %v615, 7
    %v617 = vsub.s32 0, %v616
    %v618 = vrot.slane %v302, %v617
    %v619 = vsel %vm601, %v606, %v583
    %v620 = vsel %vm601, %v610, %v584
    %v621 = vsel %vm601, %v614, %v585
    %v622 = vsel %vm601, %v618, %v586
    %v623 = vsel %vm602, %v606, %v587
    %v624 = vsel %vm602, %v610, %v588
    %v625 = vsel %vm602, %v614, %v589
    %v626 = vsel %vm602, %v618, %v590
    %vm627 = vcmp.eq.s32.totalorder %v293, 9
    %vm628 = vcmp.eq.s32.totalorder %v294, 9
    %v629 = vsel %vm627, 1, 0
    %v630 = vsel %vm628, 1, 0
    %631 = vset.pattern.permute.xlu0 0
    %632 = vperm.xlu0 %631, %v629
    %v633 = vpop.permute.xlu0 %632
    %634 = vset.pattern.permute.xlu0 0
    %635 = vperm.xlu0 %634, %v630
    %v636 = vpop.permute.xlu0 %635
    %vm637 = vcmp.eq.s32.totalorder %v633, 1
    %vm638 = vcmp.eq.s32.totalorder %v636, 1
    %v639 = vlaneseq
    %v640 = vshrl.u32 %v639, 7
    %v641 = vsub.s32 1, %v640
    %v642 = vrot.slane %v299, %v641
    %v643 = vlaneseq
    %v644 = vshrl.u32 %v643, 7
    %v645 = vsub.s32 1, %v644
    %v646 = vrot.slane %v300, %v645
    %v647 = vlaneseq
    %v648 = vshrl.u32 %v647, 7
    %v649 = vsub.s32 1, %v648
    %v650 = vrot.slane %v301, %v649
    %v651 = vlaneseq
    %v652 = vshrl.u32 %v651, 7
    %v653 = vsub.s32 1, %v652
    %v654 = vrot.slane %v302, %v653
    %v655 = vsel %vm637, %v642, %v619
    %v656 = vsel %vm637, %v646, %v620
    %v657 = vsel %vm637, %v650, %v621
    %v658 = vsel %vm637, %v654, %v622
    %v659 = vsel %vm638, %v642, %v623
    %v660 = vsel %vm638, %v646, %v624
    %v661 = vsel %vm638, %v650, %v625
    %v662 = vsel %vm638, %v654, %v626
    %v671 = vunpack.c.l.b16 %v89
    %v672 = vunpack.c.h.b16 %v89
    %v673 = vunpack.c.l.b16 %v90
    %v674 = vunpack.c.h.b16 %v90
    %v675 = vunpack.c.l.b16 %v91
    %v676 = vunpack.c.h.b16 %v91
    %v677 = vunpack.c.l.b16 %v92
    %v678 = vunpack.c.l.b16 %v93
    %v679 = vunpack.c.h.b16 %v93
    %v680 = vunpack.c.l.b16 %v94
    %v681 = vunpack.c.h.b16 %v94
    %v682 = vunpack.c.l.b16 %v95
    %v683 = vunpack.c.h.b16 %v95
    %v684 = vunpack.c.l.b16 %v96
    %v685 = vpack.c.b16 %v678, %v671
    %v686 = vpack.c.b16 %v679, %v672
    %v687 = vpack.c.b16 %v680, %v673
    %v688 = vpack.c.b16 %v681, %v674
    %v689 = vpack.c.b16 %v682, %v675
    %v690 = vpack.c.b16 %v683, %v676
    %v691 = vpack.c.b16 %v684, %v677
    %v894 = vunpack.c.l.b16 %v97
    %v895 = vunpack.c.h.b16 %v97
    %v896 = vunpack.c.l.b16 %v98
    %v897 = vunpack.c.h.b16 %v98
    %v898 = vunpack.c.l.b16 %v99
    %v899 = vunpack.c.h.b16 %v99
    %v900 = vunpack.c.l.b16 %v100
    %v901 = vunpack.c.h.b16 %v100
    %v902 = vunpack.c.l.b16 %v101
    %v903 = vunpack.c.h.b16 %v101
    %v904 = vunpack.c.l.b16 %v102
    %v905 = vunpack.c.h.b16 %v102
    %v906 = vunpack.c.l.b16 %v103
    %v907 = vunpack.c.h.b16 %v103
    %v908 = vunpack.c.l.b16 %v104
    %v909 = vunpack.c.h.b16 %v104
    %v910 = vunpack.c.l.b16 %v105
    %v911 = vunpack.c.h.b16 %v105
    %v912 = vunpack.c.l.b16 %v106
    %v913 = vunpack.c.h.b16 %v106
    %v914 = vunpack.c.l.b16 %v107
    %v915 = vunpack.c.h.b16 %v107
    %v916 = vunpack.c.l.b16 %v108
    %v917 = vunpack.c.h.b16 %v108
    %v918 = vunpack.c.l.b16 %v109
    %v919 = vunpack.c.h.b16 %v109
    %v920 = vunpack.c.l.b16 %v110
    %v921 = vunpack.c.h.b16 %v110
    %v922 = vunpack.c.l.b16 %v111
    %v923 = vunpack.c.h.b16 %v111
    %v924 = vunpack.c.l.b16 %v112
    %v925 = vunpack.c.h.b16 %v112
    %v926 = vunpack.c.l.b16 %v113
    %v927 = vunpack.c.h.b16 %v113
    %v928 = vunpack.c.l.b16 %v114
    %v929 = vunpack.c.h.b16 %v114
    %v930 = vunpack.c.l.b16 %v115
    %v931 = vunpack.c.h.b16 %v115
    %v932 = vunpack.c.l.b16 %v116
    %v933 = vunpack.c.h.b16 %v116
    %v934 = vunpack.c.l.b16 %v117
    %v935 = vunpack.c.h.b16 %v117
    %v936 = vunpack.c.l.b16 %v118
    %v937 = vunpack.c.h.b16 %v118
    %v938 = vunpack.c.l.b16 %v119
    %v939 = vunpack.c.h.b16 %v119
    %v940 = vunpack.c.l.b16 %v120
    %v941 = vunpack.c.h.b16 %v120
    %v942 = vunpack.c.l.b16 %v121
    %v943 = vunpack.c.h.b16 %v121
    %v944 = vunpack.c.l.b16 %v122
    %v945 = vunpack.c.h.b16 %v122
    %v946 = vunpack.c.l.b16 %v123
    %v947 = vunpack.c.h.b16 %v123
    %v948 = vunpack.c.l.b16 %v124
    %v949 = vunpack.c.h.b16 %v124
    %v950 = vunpack.c.l.b16 %v125
    %v951 = vunpack.c.h.b16 %v125
    %v952 = vunpack.c.l.b16 %v126
    %v953 = vunpack.c.h.b16 %v126
    %v954 = vunpack.c.l.b16 %v127
    %v955 = vunpack.c.h.b16 %v127
    %v956 = vunpack.c.l.b16 %v128
    %v957 = vunpack.c.h.b16 %v128
    %v958 = vunpack.c.l.b16 %v129
    %v959 = vunpack.c.h.b16 %v129
    %v960 = vunpack.c.l.b16 %v130
    %v961 = vunpack.c.h.b16 %v130
    %v962 = vunpack.c.l.b16 %v131
    %v963 = vunpack.c.h.b16 %v131
    %v964 = vunpack.c.l.b16 %v132
    %v965 = vunpack.c.h.b16 %v132
    %v966 = vunpack.c.l.b16 %v133
    %v967 = vunpack.c.h.b16 %v133
    %v968 = vunpack.c.l.b16 %v134
    %v969 = vunpack.c.h.b16 %v134
    %v970 = vunpack.c.l.b16 %v135
    %v971 = vunpack.c.h.b16 %v135
    %v972 = vunpack.c.l.b16 %v136
    %v973 = vunpack.c.h.b16 %v136
    %v974 = vunpack.c.l.b16 %v137
    %v975 = vunpack.c.h.b16 %v137
    %v976 = vunpack.c.l.b16 %v138
    %v977 = vunpack.c.h.b16 %v138
    %v978 = vunpack.c.l.b16 %v139
    %v979 = vunpack.c.h.b16 %v139
    %v980 = vunpack.c.l.b16 %v140
    %v981 = vunpack.c.h.b16 %v140
    %v982 = vunpack.c.l.b16 %v141
    %v983 = vunpack.c.h.b16 %v141
    %v984 = vunpack.c.l.b16 %v142
    %v985 = vunpack.c.h.b16 %v142
    %v986 = vunpack.c.l.b16 %v143
    %v987 = vunpack.c.h.b16 %v143
    %v988 = vunpack.c.l.b16 %v144
    %v989 = vunpack.c.h.b16 %v144
    %v990 = vunpack.c.l.b16 %v145
    %v991 = vunpack.c.h.b16 %v145
    %v992 = vunpack.c.l.b16 %v146
    %v993 = vunpack.c.h.b16 %v146
    %v994 = vunpack.c.l.b16 %v147
    %v995 = vunpack.c.h.b16 %v147
    %v996 = vunpack.c.l.b16 %v148
    %v997 = vunpack.c.h.b16 %v148
    %v998 = vunpack.c.l.b16 %v149
    %v999 = vunpack.c.h.b16 %v149
    %v1000 = vunpack.c.l.b16 %v150
    %v1001 = vunpack.c.h.b16 %v150
    %v1002 = vunpack.c.l.b16 %v151
    %v1003 = vunpack.c.h.b16 %v151
    %v1004 = vunpack.c.l.b16 %v152
    %v1005 = vunpack.c.h.b16 %v152
    %v1006 = vunpack.c.l.b16 %v153
    %v1007 = vunpack.c.h.b16 %v153
    %v1008 = vunpack.c.l.b16 %v154
    %v1009 = vunpack.c.h.b16 %v154
    %v1010 = vunpack.c.l.b16 %v155
    %v1011 = vunpack.c.h.b16 %v155
    %v1012 = vunpack.c.l.b16 %v156
    %v1013 = vunpack.c.h.b16 %v156
    %v1014 = vunpack.c.l.b16 %v157
    %v1015 = vunpack.c.h.b16 %v157
    %v1016 = vunpack.c.l.b16 %v158
    %v1017 = vunpack.c.h.b16 %v158
    %v1018 = vunpack.c.l.b16 %v159
    %v1019 = vunpack.c.h.b16 %v159
    %v1020 = vunpack.c.l.b16 %v160
    %v1021 = vunpack.c.h.b16 %v160
    %v1022 = vunpack.c.l.b16 %v161
    %v1023 = vunpack.c.h.b16 %v161
    %v1024 = vunpack.c.l.b16 %v162
    %v1025 = vunpack.c.h.b16 %v162
    %v1026 = vunpack.c.l.b16 %v163
    %v1027 = vunpack.c.h.b16 %v163
    %v1028 = vunpack.c.l.b16 %v164
    %v1029 = vunpack.c.h.b16 %v164
    %v1030 = vunpack.c.l.b16 %v165
    %v1031 = vunpack.c.h.b16 %v165
    %v1032 = vunpack.c.l.b16 %v166
    %v1033 = vunpack.c.h.b16 %v166
    %v1034 = vunpack.c.l.b16 %v167
    %v1035 = vunpack.c.h.b16 %v167
    %v1036 = vunpack.c.l.b16 %v168
    %v1037 = vunpack.c.h.b16 %v168
    %v1038 = vunpack.c.l.b16 %v169
    %v1039 = vunpack.c.h.b16 %v169
    %v1040 = vunpack.c.l.b16 %v170
    %v1041 = vunpack.c.h.b16 %v170
    %v1042 = vunpack.c.l.b16 %v171
    %v1043 = vunpack.c.h.b16 %v171
    %v1044 = vunpack.c.l.b16 %v172
    %v1045 = vunpack.c.h.b16 %v172
    %v1046 = vunpack.c.l.b16 %v173
    %v1047 = vunpack.c.h.b16 %v173
    %v1048 = vunpack.c.l.b16 %v174
    %v1049 = vunpack.c.h.b16 %v174
    %v1050 = vunpack.c.l.b16 %v175
    %v1051 = vunpack.c.h.b16 %v175
    %v1052 = vunpack.c.l.b16 %v176
    %v1053 = vunpack.c.h.b16 %v176
    %v1054 = vunpack.c.l.b16 %v177
    %v1055 = vunpack.c.h.b16 %v177
    %v1056 = vunpack.c.l.b16 %v178
    %v1057 = vunpack.c.h.b16 %v178
    %v1058 = vunpack.c.l.b16 %v179
    %v1059 = vunpack.c.h.b16 %v179
    %v1060 = vunpack.c.l.b16 %v180
    %v1061 = vunpack.c.h.b16 %v180
    %v1062 = vunpack.c.l.b16 %v181
    %v1063 = vunpack.c.h.b16 %v181
    %v1064 = vunpack.c.l.b16 %v182
    %v1065 = vunpack.c.h.b16 %v182
    %v1066 = vunpack.c.l.b16 %v183
    %v1067 = vunpack.c.h.b16 %v183
    %v1068 = vunpack.c.l.b16 %v184
    %v1069 = vunpack.c.h.b16 %v184
    %v1070 = vunpack.c.l.b16 %v185
    %v1071 = vunpack.c.h.b16 %v185
    %v1072 = vunpack.c.l.b16 %v186
    %v1073 = vunpack.c.h.b16 %v186
    %v1074 = vunpack.c.l.b16 %v187
    %v1075 = vunpack.c.h.b16 %v187
    %v1076 = vunpack.c.l.b16 %v188
    %v1077 = vunpack.c.h.b16 %v188
    %v1078 = vunpack.c.l.b16 %v189
    %v1079 = vunpack.c.h.b16 %v189
    %v1080 = vunpack.c.l.b16 %v190
    %v1081 = vunpack.c.h.b16 %v190
    %v1082 = vunpack.c.l.b16 %v191
    %v1083 = vunpack.c.h.b16 %v191
    %v1084 = vunpack.c.l.b16 %v192
    %v1085 = vunpack.c.h.b16 %v192
    %v1086 = vunpack.c.l.b16 %v193
    %v1087 = vunpack.c.h.b16 %v193
    %v1088 = vunpack.c.l.b16 %v194
    %v1089 = vunpack.c.h.b16 %v194
    %v1090 = vunpack.c.l.b16 %v195
    %v1091 = vunpack.c.h.b16 %v195
    %v1092 = vunpack.c.l.b16 %v196
    %v1093 = vunpack.c.h.b16 %v196
    %v1094 = vunpack.c.l.b16 %v197
    %v1095 = vunpack.c.h.b16 %v197
    %v1096 = vunpack.c.l.b16 %v198
    %v1097 = vunpack.c.h.b16 %v198
    %v1098 = vunpack.c.l.b16 %v199
    %v1099 = vunpack.c.h.b16 %v199
    %v1100 = vunpack.c.l.b16 %v200
    %v1101 = vunpack.c.h.b16 %v200
    %v1102 = vunpack.c.l.b16 %v201
    %v1103 = vunpack.c.h.b16 %v201
    %v1104 = vunpack.c.l.b16 %v202
    %v1105 = vunpack.c.h.b16 %v202
    %v1106 = vunpack.c.l.b16 %v203
    %v1107 = vunpack.c.h.b16 %v203
    %v1108 = vunpack.c.l.b16 %v204
    %v1109 = vunpack.c.h.b16 %v204
    %v1110 = vunpack.c.l.b16 %v205
    %v1111 = vunpack.c.h.b16 %v205
    %v1112 = vunpack.c.l.b16 %v206
    %v1113 = vunpack.c.h.b16 %v206
    %v1114 = vunpack.c.l.b16 %v207
    %v1115 = vunpack.c.h.b16 %v207
    %v1116 = vunpack.c.l.b16 %v208
    %v1117 = vunpack.c.h.b16 %v208
    %v1118 = vunpack.c.l.b16 %v209
    %v1119 = vunpack.c.h.b16 %v209
    %v1120 = vunpack.c.l.b16 %v210
    %v1121 = vunpack.c.h.b16 %v210
    %v1122 = vunpack.c.l.b16 %v211
    %v1123 = vunpack.c.h.b16 %v211
    %v1124 = vunpack.c.l.b16 %v212
    %v1125 = vunpack.c.h.b16 %v212
    %v1126 = vunpack.c.l.b16 %v213
    %v1127 = vunpack.c.h.b16 %v213
    %v1128 = vunpack.c.l.b16 %v214
    %v1129 = vunpack.c.h.b16 %v214
    %v1130 = vunpack.c.l.b16 %v215
    %v1131 = vunpack.c.h.b16 %v215
    %v1132 = vunpack.c.l.b16 %v216
    %v1133 = vunpack.c.h.b16 %v216
    %v1134 = vunpack.c.l.b16 %v217
    %v1135 = vunpack.c.h.b16 %v217
    %v1136 = vunpack.c.l.b16 %v218
    %v1137 = vunpack.c.h.b16 %v218
    %v1138 = vunpack.c.l.b16 %v219
    %v1139 = vunpack.c.h.b16 %v219
    %v1140 = vunpack.c.l.b16 %v220
    %v1141 = vunpack.c.h.b16 %v220
    %v1142 = vunpack.c.l.b16 %v221
    %v1143 = vunpack.c.h.b16 %v221
    %v1144 = vunpack.c.l.b16 %v222
    %v1145 = vunpack.c.h.b16 %v222
    %v1146 = vunpack.c.l.b16 %v223
    %v1147 = vunpack.c.h.b16 %v223
    %v1148 = vunpack.c.l.b16 %v224
    %v1149 = vunpack.c.h.b16 %v224
    %v1150 = vunpack.c.l.b16 %v225
    %v1151 = vunpack.c.h.b16 %v225
    %v1152 = vunpack.c.l.b16 %v226
    %v1153 = vunpack.c.h.b16 %v226
    %v1154 = vunpack.c.l.b16 %v227
    %v1155 = vunpack.c.h.b16 %v227
    %v1156 = vunpack.c.l.b16 %v228
    %v1157 = vunpack.c.h.b16 %v228
    %v1158 = vunpack.c.l.b16 %v229
    %v1159 = vunpack.c.h.b16 %v229
    %v1160 = vunpack.c.l.b16 %v230
    %v1161 = vunpack.c.h.b16 %v230
    %v1162 = vunpack.c.l.b16 %v231
    %v1163 = vunpack.c.h.b16 %v231
    %v1164 = vunpack.c.l.b16 %v232
    %v1165 = vunpack.c.h.b16 %v232
    %v1166 = vunpack.c.l.b16 %v233
    %v1167 = vunpack.c.h.b16 %v233
    %v1168 = vunpack.c.l.b16 %v234
    %v1169 = vunpack.c.h.b16 %v234
    %v1170 = vunpack.c.l.b16 %v235
    %v1171 = vunpack.c.h.b16 %v235
    %v1172 = vunpack.c.l.b16 %v236
    %v1173 = vunpack.c.h.b16 %v236
    %v1174 = vunpack.c.l.b16 %v237
    %v1175 = vunpack.c.h.b16 %v237
    %v1176 = vunpack.c.l.b16 %v238
    %v1177 = vunpack.c.h.b16 %v238
    %v1178 = vunpack.c.l.b16 %v239
    %v1179 = vunpack.c.h.b16 %v239
    %v1180 = vunpack.c.l.b16 %v240
    %v1181 = vunpack.c.h.b16 %v240
    %v1182 = vunpack.c.l.b16 %v241
    %v1183 = vunpack.c.h.b16 %v241
    %v1184 = vunpack.c.l.b16 %v242
    %v1185 = vunpack.c.h.b16 %v242
    %v1186 = vunpack.c.l.b16 %v243
    %v1187 = vunpack.c.h.b16 %v243
    %v1188 = vunpack.c.l.b16 %v244
    %v1189 = vunpack.c.h.b16 %v244
    %v1190 = vunpack.c.l.b16 %v245
    %v1191 = vunpack.c.h.b16 %v245
    %v1192 = vunpack.c.l.b16 %v246
    %v1193 = vunpack.c.h.b16 %v246
    %v1194 = vunpack.c.l.b16 %v247
    %v1195 = vunpack.c.h.b16 %v247
    %v1196 = vunpack.c.l.b16 %v248
    %v1197 = vunpack.c.h.b16 %v248
    %v1198 = vunpack.c.l.b16 %v249
    %v1199 = vunpack.c.h.b16 %v249
    %v1200 = vunpack.c.l.b16 %v250
    %v1201 = vunpack.c.h.b16 %v250
    %v1202 = vunpack.c.l.b16 %v251
    %v1203 = vunpack.c.h.b16 %v251
    %v1204 = vunpack.c.l.b16 %v252
    %v1205 = vunpack.c.h.b16 %v252
    %v1206 = vunpack.c.l.b16 %v253
    %v1207 = vunpack.c.h.b16 %v253
    %v1208 = vunpack.c.l.b16 %v254
    %v1209 = vunpack.c.h.b16 %v254
    %v1210 = vunpack.c.l.b16 %v255
    %v1211 = vunpack.c.h.b16 %v255
    %v1212 = vunpack.c.l.b16 %v256
    %v1213 = vunpack.c.h.b16 %v256
    %v1214 = vunpack.c.l.b16 %v257
    %v1215 = vunpack.c.h.b16 %v257
    %v1216 = vunpack.c.l.b16 %v258
    %v1217 = vunpack.c.h.b16 %v258
    %v1218 = vunpack.c.l.b16 %v259
    %v1219 = vunpack.c.h.b16 %v259
    %v1220 = vunpack.c.l.b16 %v260
    %v1221 = vunpack.c.h.b16 %v260
    %v1222 = vunpack.c.l.b16 %v261
    %v1223 = vunpack.c.h.b16 %v261
    %v1224 = vunpack.c.l.b16 %v262
    %v1225 = vunpack.c.h.b16 %v262
    %v1226 = vunpack.c.l.b16 %v263
    %v1227 = vunpack.c.h.b16 %v263
    %v1228 = vunpack.c.l.b16 %v264
    %v1229 = vunpack.c.h.b16 %v264
    %v1230 = vunpack.c.l.b16 %v265
    %v1231 = vunpack.c.h.b16 %v265
    %v1232 = vunpack.c.l.b16 %v266
    %v1233 = vunpack.c.h.b16 %v266
    %v1234 = vunpack.c.l.b16 %v267
    %v1235 = vunpack.c.h.b16 %v267
    %v1236 = vunpack.c.l.b16 %v268
    %v1237 = vunpack.c.h.b16 %v268
    %v1238 = vunpack.c.l.b16 %v269
    %v1239 = vunpack.c.h.b16 %v269
    %v1240 = vunpack.c.l.b16 %v270
    %v1241 = vunpack.c.h.b16 %v270
    %v1242 = vunpack.c.l.b16 %v271
    %v1243 = vunpack.c.h.b16 %v271
    %v1244 = vunpack.c.l.b16 %v272
    %v1245 = vunpack.c.h.b16 %v272
    %v1246 = vunpack.c.l.b16 %v273
    %v1247 = vunpack.c.h.b16 %v273
    %v1248 = vunpack.c.l.b16 %v274
    %v1249 = vunpack.c.h.b16 %v274
    %v1250 = vunpack.c.l.b16 %v275
    %v1251 = vunpack.c.h.b16 %v275
    %v1252 = vunpack.c.l.b16 %v276
    %v1253 = vunpack.c.h.b16 %v276
    %v1254 = vunpack.c.l.b16 %v277
    %v1255 = vunpack.c.h.b16 %v277
    %v1256 = vunpack.c.l.b16 %v278
    %v1257 = vunpack.c.h.b16 %v278
    %v1258 = vunpack.c.l.b16 %v279
    %v1259 = vunpack.c.h.b16 %v279
    %v1260 = vunpack.c.l.b16 %v280
    %v1261 = vunpack.c.h.b16 %v280
    %v1262 = vunpack.c.l.b16 %v281
    %v1263 = vunpack.c.h.b16 %v281
    %v1264 = vunpack.c.l.b16 %v282
    %v1265 = vunpack.c.h.b16 %v282
    %v1266 = vunpack.c.l.b16 %v283
    %v1267 = vunpack.c.h.b16 %v283
    %v1268 = vunpack.c.l.b16 %v284
    %v1269 = vunpack.c.h.b16 %v284
    %v1270 = vunpack.c.l.b16 %v285
    %v1271 = vunpack.c.h.b16 %v285
    %v1272 = vunpack.c.l.b16 %v286
    %v1273 = vunpack.c.h.b16 %v286
    %v1274 = vunpack.c.l.b16 %v287
    %v1275 = vunpack.c.h.b16 %v287
    %v1276 = vunpack.c.l.b16 %v288
    %v1277 = vunpack.c.h.b16 %v288
    %v1278 = vunpack.c.l.b16 %v289
    %v1279 = vunpack.c.h.b16 %v289
    %v1280 = vunpack.c.l.b16 %v290
    %v1281 = vunpack.c.h.b16 %v290
    %v1282 = vunpack.c.l.b16 %v291
    %v1283 = vunpack.c.h.b16 %v291
    %v1284 = vunpack.c.l.b16 %v292
    %v1285 = vunpack.c.h.b16 %v292
    %v1286 = vpack.c.b16 %v898, %v894
    %v1287 = vpack.c.b16 %v899, %v895
    %v1288 = vpack.c.b16 %v900, %v896
    %v1289 = vpack.c.b16 %v901, %v897
    %v1290 = vpack.c.b16 %v906, %v902
    %v1291 = vpack.c.b16 %v907, %v903
    %v1292 = vpack.c.b16 %v908, %v904
    %v1293 = vpack.c.b16 %v909, %v905
    %v1294 = vpack.c.b16 %v914, %v910
    %v1295 = vpack.c.b16 %v915, %v911
    %v1296 = vpack.c.b16 %v916, %v912
    %v1297 = vpack.c.b16 %v917, %v913
    %v1298 = vpack.c.b16 %v922, %v918
    %v1299 = vpack.c.b16 %v923, %v919
    %v1300 = vpack.c.b16 %v924, %v920
    %v1301 = vpack.c.b16 %v925, %v921
    %v1302 = vpack.c.b16 %v930, %v926
    %v1303 = vpack.c.b16 %v931, %v927
    %v1304 = vpack.c.b16 %v932, %v928
    %v1305 = vpack.c.b16 %v933, %v929
    %v1306 = vpack.c.b16 %v938, %v934
    %v1307 = vpack.c.b16 %v939, %v935
    %v1308 = vpack.c.b16 %v940, %v936
    %v1309 = vpack.c.b16 %v941, %v937
    %v1310 = vpack.c.b16 %v946, %v942
    %v1311 = vpack.c.b16 %v947, %v943
    %v1312 = vpack.c.b16 %v948, %v944
    %v1313 = vpack.c.b16 %v949, %v945
    %v1314 = vpack.c.b16 %v954, %v950
    %v1315 = vpack.c.b16 %v955, %v951
    %v1316 = vpack.c.b16 %v956, %v952
    %v1317 = vpack.c.b16 %v957, %v953
    %v1318 = vpack.c.b16 %v962, %v958
    %v1319 = vpack.c.b16 %v963, %v959
    %v1320 = vpack.c.b16 %v964, %v960
    %v1321 = vpack.c.b16 %v965, %v961
    %v1322 = vpack.c.b16 %v970, %v966
    %v1323 = vpack.c.b16 %v971, %v967
    %v1324 = vpack.c.b16 %v972, %v968
    %v1325 = vpack.c.b16 %v973, %v969
    %v1326 = vpack.c.b16 %v978, %v974
    %v1327 = vpack.c.b16 %v979, %v975
    %v1328 = vpack.c.b16 %v980, %v976
    %v1329 = vpack.c.b16 %v981, %v977
    %v1330 = vpack.c.b16 %v986, %v982
    %v1331 = vpack.c.b16 %v987, %v983
    %v1332 = vpack.c.b16 %v988, %v984
    %v1333 = vpack.c.b16 %v989, %v985
    %v1334 = vpack.c.b16 %v994, %v990
    %v1335 = vpack.c.b16 %v995, %v991
    %v1336 = vpack.c.b16 %v996, %v992
    %v1337 = vpack.c.b16 %v997, %v993
    %v1338 = vpack.c.b16 %v1002, %v998
    %v1339 = vpack.c.b16 %v1003, %v999
    %v1340 = vpack.c.b16 %v1004, %v1000
    %v1341 = vpack.c.b16 %v1005, %v1001
    %v1342 = vpack.c.b16 %v1010, %v1006
    %v1343 = vpack.c.b16 %v1011, %v1007
    %v1344 = vpack.c.b16 %v1012, %v1008
    %v1345 = vpack.c.b16 %v1013, %v1009
    %v1346 = vpack.c.b16 %v1018, %v1014
    %v1347 = vpack.c.b16 %v1019, %v1015
    %v1348 = vpack.c.b16 %v1020, %v1016
    %v1349 = vpack.c.b16 %v1021, %v1017
    %v1350 = vpack.c.b16 %v1026, %v1022
    %v1351 = vpack.c.b16 %v1027, %v1023
    %v1352 = vpack.c.b16 %v1028, %v1024
    %v1353 = vpack.c.b16 %v1029, %v1025
    %v1354 = vpack.c.b16 %v1034, %v1030
    %v1355 = vpack.c.b16 %v1035, %v1031
    %v1356 = vpack.c.b16 %v1036, %v1032
    %v1357 = vpack.c.b16 %v1037, %v1033
    %v1358 = vpack.c.b16 %v1042, %v1038
    %v1359 = vpack.c.b16 %v1043, %v1039
    %v1360 = vpack.c.b16 %v1044, %v1040
    %v1361 = vpack.c.b16 %v1045, %v1041
    %v1362 = vpack.c.b16 %v1050, %v1046
    %v1363 = vpack.c.b16 %v1051, %v1047
    %v1364 = vpack.c.b16 %v1052, %v1048
    %v1365 = vpack.c.b16 %v1053, %v1049
    %v1366 = vpack.c.b16 %v1058, %v1054
    %v1367 = vpack.c.b16 %v1059, %v1055
    %v1368 = vpack.c.b16 %v1060, %v1056
    %v1369 = vpack.c.b16 %v1061, %v1057
    %v1370 = vpack.c.b16 %v1066, %v1062
    %v1371 = vpack.c.b16 %v1067, %v1063
    %v1372 = vpack.c.b16 %v1068, %v1064
    %v1373 = vpack.c.b16 %v1069, %v1065
    %v1374 = vpack.c.b16 %v1074, %v1070
    %v1375 = vpack.c.b16 %v1075, %v1071
    %v1376 = vpack.c.b16 %v1076, %v1072
    %v1377 = vpack.c.b16 %v1077, %v1073
    %v1378 = vpack.c.b16 %v1082, %v1078
    %v1379 = vpack.c.b16 %v1083, %v1079
    %v1380 = vpack.c.b16 %v1084, %v1080
    %v1381 = vpack.c.b16 %v1085, %v1081
    %v1382 = vpack.c.b16 %v1090, %v1086
    %v1383 = vpack.c.b16 %v1091, %v1087
    %v1384 = vpack.c.b16 %v1092, %v1088
    %v1385 = vpack.c.b16 %v1093, %v1089
    %v1386 = vpack.c.b16 %v1098, %v1094
    %v1387 = vpack.c.b16 %v1099, %v1095
    %v1388 = vpack.c.b16 %v1100, %v1096
    %v1389 = vpack.c.b16 %v1101, %v1097
    %v1390 = vpack.c.b16 %v1106, %v1102
    %v1391 = vpack.c.b16 %v1107, %v1103
    %v1392 = vpack.c.b16 %v1108, %v1104
    %v1393 = vpack.c.b16 %v1109, %v1105
    %v1394 = vpack.c.b16 %v1114, %v1110
    %v1395 = vpack.c.b16 %v1115, %v1111
    %v1396 = vpack.c.b16 %v1116, %v1112
    %v1397 = vpack.c.b16 %v1117, %v1113
    %v1398 = vpack.c.b16 %v1122, %v1118
    %v1399 = vpack.c.b16 %v1123, %v1119
    %v1400 = vpack.c.b16 %v1124, %v1120
    %v1401 = vpack.c.b16 %v1125, %v1121
    %v1402 = vpack.c.b16 %v1130, %v1126
    %v1403 = vpack.c.b16 %v1131, %v1127
    %v1404 = vpack.c.b16 %v1132, %v1128
    %v1405 = vpack.c.b16 %v1133, %v1129
    %v1406 = vpack.c.b16 %v1138, %v1134
    %v1407 = vpack.c.b16 %v1139, %v1135
    %v1408 = vpack.c.b16 %v1140, %v1136
    %v1409 = vpack.c.b16 %v1141, %v1137
    %v1410 = vpack.c.b16 %v1146, %v1142
    %v1411 = vpack.c.b16 %v1147, %v1143
    %v1412 = vpack.c.b16 %v1148, %v1144
    %v1413 = vpack.c.b16 %v1149, %v1145
    %v1414 = vpack.c.b16 %v1154, %v1150
    %v1415 = vpack.c.b16 %v1155, %v1151
    %v1416 = vpack.c.b16 %v1156, %v1152
    %v1417 = vpack.c.b16 %v1157, %v1153
    %v1418 = vpack.c.b16 %v1162, %v1158
    %v1419 = vpack.c.b16 %v1163, %v1159
    %v1420 = vpack.c.b16 %v1164, %v1160
    %v1421 = vpack.c.b16 %v1165, %v1161
    %v1422 = vpack.c.b16 %v1170, %v1166
    %v1423 = vpack.c.b16 %v1171, %v1167
    %v1424 = vpack.c.b16 %v1172, %v1168
    %v1425 = vpack.c.b16 %v1173, %v1169
    %v1426 = vpack.c.b16 %v1178, %v1174
    %v1427 = vpack.c.b16 %v1179, %v1175
    %v1428 = vpack.c.b16 %v1180, %v1176
    %v1429 = vpack.c.b16 %v1181, %v1177
    %v1430 = vpack.c.b16 %v1186, %v1182
    %v1431 = vpack.c.b16 %v1187, %v1183
    %v1432 = vpack.c.b16 %v1188, %v1184
    %v1433 = vpack.c.b16 %v1189, %v1185
    %v1434 = vpack.c.b16 %v1194, %v1190
    %v1435 = vpack.c.b16 %v1195, %v1191
    %v1436 = vpack.c.b16 %v1196, %v1192
    %v1437 = vpack.c.b16 %v1197, %v1193
    %v1438 = vpack.c.b16 %v1202, %v1198
    %v1439 = vpack.c.b16 %v1203, %v1199
    %v1440 = vpack.c.b16 %v1204, %v1200
    %v1441 = vpack.c.b16 %v1205, %v1201
    %v1442 = vpack.c.b16 %v1210, %v1206
    %v1443 = vpack.c.b16 %v1211, %v1207
    %v1444 = vpack.c.b16 %v1212, %v1208
    %v1445 = vpack.c.b16 %v1213, %v1209
    %v1446 = vpack.c.b16 %v1218, %v1214
    %v1447 = vpack.c.b16 %v1219, %v1215
    %v1448 = vpack.c.b16 %v1220, %v1216
    %v1449 = vpack.c.b16 %v1221, %v1217
    %v1450 = vpack.c.b16 %v1226, %v1222
    %v1451 = vpack.c.b16 %v1227, %v1223
    %v1452 = vpack.c.b16 %v1228, %v1224
    %v1453 = vpack.c.b16 %v1229, %v1225
    %v1454 = vpack.c.b16 %v1234, %v1230
    %v1455 = vpack.c.b16 %v1235, %v1231
    %v1456 = vpack.c.b16 %v1236, %v1232
    %v1457 = vpack.c.b16 %v1237, %v1233
    %v1458 = vpack.c.b16 %v1242, %v1238
    %v1459 = vpack.c.b16 %v1243, %v1239
    %v1460 = vpack.c.b16 %v1244, %v1240
    %v1461 = vpack.c.b16 %v1245, %v1241
    %v1462 = vpack.c.b16 %v1250, %v1246
    %v1463 = vpack.c.b16 %v1251, %v1247
    %v1464 = vpack.c.b16 %v1252, %v1248
    %v1465 = vpack.c.b16 %v1253, %v1249
    %v1466 = vpack.c.b16 %v1258, %v1254
    %v1467 = vpack.c.b16 %v1259, %v1255
    %v1468 = vpack.c.b16 %v1260, %v1256
    %v1469 = vpack.c.b16 %v1261, %v1257
    %v1470 = vpack.c.b16 %v1266, %v1262
    %v1471 = vpack.c.b16 %v1267, %v1263
    %v1472 = vpack.c.b16 %v1268, %v1264
    %v1473 = vpack.c.b16 %v1269, %v1265
    %v1474 = vpack.c.b16 %v1274, %v1270
    %v1475 = vpack.c.b16 %v1275, %v1271
    %v1476 = vpack.c.b16 %v1276, %v1272
    %v1477 = vpack.c.b16 %v1277, %v1273
    %v1478 = vpack.c.b16 %v1282, %v1278
    %v1479 = vpack.c.b16 %v1283, %v1279
    %v1480 = vpack.c.b16 %v1284, %v1280
    %v1481 = vpack.c.b16 %v1285, %v1281
    %vm1678 = vcmask 130048
    %v1680 = vsel %vm1678, %v691, 0
    %1682 = vmatprep.subr.bf16.mxu0 %v1287
    %1683 = vmatpush1.bf16.msra.mxu0 %v1286
    %1684 = vmatprep.subr.bf16.mxu0 %v1291
    %1685 = vmatpush1.bf16.msra.mxu0 %v1290
    %1686 = vmatprep.subr.bf16.mxu0 %v1295
    %1687 = vmatpush1.bf16.msra.mxu0 %v1294
    %1688 = vmatprep.subr.bf16.mxu0 %v1299
    %1689 = vmatpush1.bf16.msra.mxu0 %v1298
    %1690 = vmatprep.subr.bf16.mxu0 %v1303
    %1691 = vmatpush1.bf16.msra.mxu0 %v1302
    %1692 = vmatprep.subr.bf16.mxu0 %v1307
    %1693 = vmatpush1.bf16.msra.mxu0 %v1306
    %1694 = vmatprep.subr.bf16.mxu0 %v1311
    %1695 = vmatpush1.bf16.msra.mxu0 %v1310
    %1696 = vmatprep.subr.bf16.mxu0 %v1315
    %1697 = vmatpush1.bf16.msra.mxu0 %v1314
    %1698 = vmatprep.subr.bf16.mxu0 %v1319
    %1699 = vmatpush1.bf16.msra.mxu0 %v1318
    %1700 = vmatprep.subr.bf16.mxu0 %v1323
    %1701 = vmatpush1.bf16.msra.mxu0 %v1322
    %1702 = vmatprep.subr.bf16.mxu0 %v1327
    %1703 = vmatpush1.bf16.msra.mxu0 %v1326
    %1704 = vmatprep.subr.bf16.mxu0 %v1331
    %1705 = vmatpush1.bf16.msra.mxu0 %v1330
    %1706 = vmatprep.subr.bf16.mxu0 %v1335
    %1707 = vmatpush1.bf16.msra.mxu0 %v1334
    %1708 = vmatprep.subr.bf16.mxu0 %v1339
    %1709 = vmatpush1.bf16.msra.mxu0 %v1338
    %1710 = vmatprep.subr.bf16.mxu0 %v1343
    %1711 = vmatpush1.bf16.msra.mxu0 %v1342
    %1712 = vmatprep.subr.bf16.mxu0 %v1347
    %1713 = vmatpush1.bf16.msra.mxu0 %v1346
    %1714 = vmatprep.mubr.bf16.mxu0 %v686
    %1715 = vmatmul.mubr.bf16.gmra.mrb[0].mxu0 %v685
    %v1716 = vpop.f32.mrb[0].mxu0
    %v1717 = vadd.f32 %v655, %v1716
    %v1718 = vpop.f32.mrb[0].mxu0
    %v1719 = vadd.f32 %v656, %v1718
    %v1720 = vpop.f32.mrb[0].mxu0
    %v1721 = vadd.f32 %v659, %v1720
    %v1722 = vpop.f32.mrb[0].mxu0
    %v1723 = vadd.f32 %v660, %v1722
    %1724 = vdwg.mxu0
    %1725 = vmatprep.subr.bf16.mxu0 %v1351
    %1726 = vmatpush1.bf16.msra.mxu0 %v1350
    %1727 = vmatprep.subr.bf16.mxu0 %v1355
    %1728 = vmatpush1.bf16.msra.mxu0 %v1354
    %1729 = vmatprep.subr.bf16.mxu0 %v1359
    %1730 = vmatpush1.bf16.msra.mxu0 %v1358
    %1731 = vmatprep.subr.bf16.mxu0 %v1363
    %1732 = vmatpush1.bf16.msra.mxu0 %v1362
    %1733 = vmatprep.subr.bf16.mxu0 %v1367
    %1734 = vmatpush1.bf16.msra.mxu0 %v1366
    %1735 = vmatprep.subr.bf16.mxu0 %v1371
    %1736 = vmatpush1.bf16.msra.mxu0 %v1370
    %1737 = vmatprep.subr.bf16.mxu0 %v1375
    %1738 = vmatpush1.bf16.msra.mxu0 %v1374
    %1739 = vmatprep.subr.bf16.mxu0 %v1379
    %1740 = vmatpush1.bf16.msra.mxu0 %v1378
    %1741 = vmatprep.subr.bf16.mxu0 %v1383
    %1742 = vmatpush1.bf16.msra.mxu0 %v1382
    %1743 = vmatprep.subr.bf16.mxu0 %v1387
    %1744 = vmatpush1.bf16.msra.mxu0 %v1386
    %1745 = vmatprep.subr.bf16.mxu0 %v1391
    %1746 = vmatpush1.bf16.msra.mxu0 %v1390
    %1747 = vmatprep.subr.bf16.mxu0 %v1395
    %1748 = vmatpush1.bf16.msra.mxu0 %v1394
    %1749 = vmatprep.subr.bf16.mxu0 %v1399
    %1750 = vmatpush1.bf16.msra.mxu0 %v1398
    %1751 = vmatprep.subr.bf16.mxu0 %v1403
    %1752 = vmatpush1.bf16.msra.mxu0 %v1402
    %1753 = vmatprep.subr.bf16.mxu0 %v1407
    %1754 = vmatpush1.bf16.msra.mxu0 %v1406
    %1755 = vmatprep.subr.bf16.mxu0 %v1411
    %1756 = vmatpush1.bf16.msra.mxu0 %v1410
    %1757 = vmatprep.mubr.bf16.mxu0 %v688
    %1758 = vmatmul.mubr.bf16.gmra.mrb[0].mxu0 %v687
    %v1759 = vpop.f32.mrb[0].mxu0
    %v1760 = vadd.f32 %v1717, %v1759
    %v1761 = vpop.f32.mrb[0].mxu0
    %v1762 = vadd.f32 %v1719, %v1761
    %v1763 = vpop.f32.mrb[0].mxu0
    %v1764 = vadd.f32 %v1721, %v1763
    %v1765 = vpop.f32.mrb[0].mxu0
    %v1766 = vadd.f32 %v1723, %v1765
    %1767 = vdwg.mxu0
    %1768 = vmatprep.subr.bf16.mxu0 %v1415
    %1769 = vmatpush1.bf16.msra.mxu0 %v1414
    %1770 = vmatprep.subr.bf16.mxu0 %v1419
    %1771 = vmatpush1.bf16.msra.mxu0 %v1418
    %1772 = vmatprep.subr.bf16.mxu0 %v1423
    %1773 = vmatpush1.bf16.msra.mxu0 %v1422
    %1774 = vmatprep.subr.bf16.mxu0 %v1427
    %1775 = vmatpush1.bf16.msra.mxu0 %v1426
    %1776 = vmatprep.subr.bf16.mxu0 %v1431
    %1777 = vmatpush1.bf16.msra.mxu0 %v1430
    %1778 = vmatprep.subr.bf16.mxu0 %v1435
    %1779 = vmatpush1.bf16.msra.mxu0 %v1434
    %1780 = vmatprep.subr.bf16.mxu0 %v1439
    %1781 = vmatpush1.bf16.msra.mxu0 %v1438
    %1782 = vmatprep.subr.bf16.mxu0 %v1443
    %1783 = vmatpush1.bf16.msra.mxu0 %v1442
    %1784 = vmatprep.subr.bf16.mxu0 %v1447
    %1785 = vmatpush1.bf16.msra.mxu0 %v1446
    %1786 = vmatprep.subr.bf16.mxu0 %v1451
    %1787 = vmatpush1.bf16.msra.mxu0 %v1450
    %1788 = vmatprep.subr.bf16.mxu0 %v1455
    %1789 = vmatpush1.bf16.msra.mxu0 %v1454
    %1790 = vmatprep.subr.bf16.mxu0 %v1459
    %1791 = vmatpush1.bf16.msra.mxu0 %v1458
    %1792 = vmatprep.subr.bf16.mxu0 %v1463
    %1793 = vmatpush1.bf16.msra.mxu0 %v1462
    %1794 = vmatprep.subr.bf16.mxu0 %v1467
    %1795 = vmatpush1.bf16.msra.mxu0 %v1466
    %1796 = vmatprep.subr.bf16.mxu0 %v1471
    %1797 = vmatpush1.bf16.msra.mxu0 %v1470
    %1798 = vmatprep.subr.bf16.mxu0 %v1475
    %1799 = vmatpush1.bf16.msra.mxu0 %v1474
    %1800 = vmatprep.mubr.bf16.mxu0 %v690
    %1801 = vmatmul.mubr.bf16.gmra.mrb[0].mxu0 %v689
    %v1802 = vpop.f32.mrb[0].mxu0
    %v1803 = vadd.f32 %v1760, %v1802
    %v1804 = vpop.f32.mrb[0].mxu0
    %v1805 = vadd.f32 %v1762, %v1804
    %v1806 = vpop.f32.mrb[0].mxu0
    %v1807 = vadd.f32 %v1764, %v1806
    %v1808 = vpop.f32.mrb[0].mxu0
    %v1809 = vadd.f32 %v1766, %v1808
    %1810 = vdwg.mxu0
    %1811 = vmatprep.subr.bf16.mxu0 %v1479
    %1812 = vmatpush1.bf16.msra.mxu0 %v1478
    %1813 = vmatprep.subr.bf16.mxu0 0
    %1814 = vmatpush1.bf16.msra.mxu0 0
    %1815 = vmatprep.subr.bf16.mxu0 0
    %1816 = vmatpush1.bf16.msra.mxu0 0
    %1817 = vmatprep.subr.bf16.mxu0 0
    %1818 = vmatpush1.bf16.msra.mxu0 0
    %1819 = vmatprep.subr.bf16.mxu0 0
    %1820 = vmatpush1.bf16.msra.mxu0 0
    %1821 = vmatprep.subr.bf16.mxu0 0
    %1822 = vmatpush1.bf16.msra.mxu0 0
    %1823 = vmatprep.subr.bf16.mxu0 0
    %1824 = vmatpush1.bf16.msra.mxu0 0
    %1825 = vmatprep.subr.bf16.mxu0 0
    %1826 = vmatpush1.bf16.msra.mxu0 0
    %1827 = vmatprep.subr.bf16.mxu0 0
    %1828 = vmatpush1.bf16.msra.mxu0 0
    %1829 = vmatprep.subr.bf16.mxu0 0
    %1830 = vmatpush1.bf16.msra.mxu0 0
    %1831 = vmatprep.subr.bf16.mxu0 0
    %1832 = vmatpush1.bf16.msra.mxu0 0
    %1833 = vmatprep.subr.bf16.mxu0 0
    %1834 = vmatpush1.bf16.msra.mxu0 0
    %1835 = vmatprep.subr.bf16.mxu0 0
    %1836 = vmatpush1.bf16.msra.mxu0 0
    %1837 = vmatprep.subr.bf16.mxu0 0
    %1838 = vmatpush1.bf16.msra.mxu0 0
    %1839 = vmatprep.subr.bf16.mxu0 0
    %1840 = vmatpush1.bf16.msra.mxu0 0
    %1841 = vmatprep.subr.bf16.mxu0 0
    %1842 = vmatpush1.bf16.msra.mxu0 0
    %1843 = vmatprep.mubr.bf16.mxu0 0
    %1844 = vmatmul.mubr.bf16.gmra.mrb[0].mxu0 %v1680
    %v1845 = vpop.f32.mrb[0].mxu0
    %v1846 = vadd.f32 %v1803, %v1845
    %v1847 = vpop.f32.mrb[0].mxu0
    %v1848 = vadd.f32 %v1805, %v1847
    %v1849 = vpop.f32.mrb[0].mxu0
    %v1850 = vadd.f32 %v1807, %v1849
    %v1851 = vpop.f32.mrb[0].mxu0
    %v1852 = vadd.f32 %v1809, %v1851
    %1853 = vdwg.mxu0
    %1854 = vmatprep.subr.bf16.mxu0 %v1289
    %1855 = vmatpush1.bf16.msra.mxu0 %v1288
    %1856 = vmatprep.subr.bf16.mxu0 %v1293
    %1857 = vmatpush1.bf16.msra.mxu0 %v1292
    %1858 = vmatprep.subr.bf16.mxu0 %v1297
    %1859 = vmatpush1.bf16.msra.mxu0 %v1296
    %1860 = vmatprep.subr.bf16.mxu0 %v1301
    %1861 = vmatpush1.bf16.msra.mxu0 %v1300
    %1862 = vmatprep.subr.bf16.mxu0 %v1305
    %1863 = vmatpush1.bf16.msra.mxu0 %v1304
    %1864 = vmatprep.subr.bf16.mxu0 %v1309
    %1865 = vmatpush1.bf16.msra.mxu0 %v1308
    %1866 = vmatprep.subr.bf16.mxu0 %v1313
    %1867 = vmatpush1.bf16.msra.mxu0 %v1312
    %1868 = vmatprep.subr.bf16.mxu0 %v1317
    %1869 = vmatpush1.bf16.msra.mxu0 %v1316
    %1870 = vmatprep.subr.bf16.mxu0 %v1321
    %1871 = vmatpush1.bf16.msra.mxu0 %v1320
    %1872 = vmatprep.subr.bf16.mxu0 %v1325
    %1873 = vmatpush1.bf16.msra.mxu0 %v1324
    %1874 = vmatprep.subr.bf16.mxu0 %v1329
    %1875 = vmatpush1.bf16.msra.mxu0 %v1328
    %1876 = vmatprep.subr.bf16.mxu0 %v1333
    %1877 = vmatpush1.bf16.msra.mxu0 %v1332
    %1878 = vmatprep.subr.bf16.mxu0 %v1337
    %1879 = vmatpush1.bf16.msra.mxu0 %v1336
    %1880 = vmatprep.subr.bf16.mxu0 %v1341
    %1881 = vmatpush1.bf16.msra.mxu0 %v1340
    %1882 = vmatprep.subr.bf16.mxu0 %v1345
    %1883 = vmatpush1.bf16.msra.mxu0 %v1344
    %1884 = vmatprep.subr.bf16.mxu0 %v1349
    %1885 = vmatpush1.bf16.msra.mxu0 %v1348
    %1886 = vmatprep.mubr.bf16.mxu0 %v686
    %1887 = vmatmul.mubr.bf16.gmra.mrb[0].mxu0 %v685
    %v1888 = vpop.f32.mrb[0].mxu0
    %v1889 = vadd.f32 %v657, %v1888
    %v1890 = vpop.f32.mrb[0].mxu0
    %v1891 = vadd.f32 %v658, %v1890
    %v1892 = vpop.f32.mrb[0].mxu0
    %v1893 = vadd.f32 %v661, %v1892
    %v1894 = vpop.f32.mrb[0].mxu0
    %v1895 = vadd.f32 %v662, %v1894
    %1896 = vdwg.mxu0
    %1897 = vmatprep.subr.bf16.mxu0 %v1353
    %1898 = vmatpush1.bf16.msra.mxu0 %v1352
    %1899 = vmatprep.subr.bf16.mxu0 %v1357
    %1900 = vmatpush1.bf16.msra.mxu0 %v1356
    %1901 = vmatprep.subr.bf16.mxu0 %v1361
    %1902 = vmatpush1.bf16.msra.mxu0 %v1360
    %1903 = vmatprep.subr.bf16.mxu0 %v1365
    %1904 = vmatpush1.bf16.msra.mxu0 %v1364
    %1905 = vmatprep.subr.bf16.mxu0 %v1369
    %1906 = vmatpush1.bf16.msra.mxu0 %v1368
    %1907 = vmatprep.subr.bf16.mxu0 %v1373
    %1908 = vmatpush1.bf16.msra.mxu0 %v1372
    %1909 = vmatprep.subr.bf16.mxu0 %v1377
    %1910 = vmatpush1.bf16.msra.mxu0 %v1376
    %1911 = vmatprep.subr.bf16.mxu0 %v1381
    %1912 = vmatpush1.bf16.msra.mxu0 %v1380
    %1913 = vmatprep.subr.bf16.mxu0 %v1385
    %1914 = vmatpush1.bf16.msra.mxu0 %v1384
    %1915 = vmatprep.subr.bf16.mxu0 %v1389
    %1916 = vmatpush1.bf16.msra.mxu0 %v1388
    %1917 = vmatprep.subr.bf16.mxu0 %v1393
    %1918 = vmatpush1.bf16.msra.mxu0 %v1392
    %1919 = vmatprep.subr.bf16.mxu0 %v1397
    %1920 = vmatpush1.bf16.msra.mxu0 %v1396
    %1921 = vmatprep.subr.bf16.mxu0 %v1401
    %1922 = vmatpush1.bf16.msra.mxu0 %v1400
    %1923 = vmatprep.subr.bf16.mxu0 %v1405
    %1924 = vmatpush1.bf16.msra.mxu0 %v1404
    %1925 = vmatprep.subr.bf16.mxu0 %v1409
    %1926 = vmatpush1.bf16.msra.mxu0 %v1408
    %1927 = vmatprep.subr.bf16.mxu0 %v1413
    %1928 = vmatpush1.bf16.msra.mxu0 %v1412
    %1929 = vmatprep.mubr.bf16.mxu0 %v688
    %1930 = vmatmul.mubr.bf16.gmra.mrb[0].mxu0 %v687
    %v1931 = vpop.f32.mrb[0].mxu0
    %v1932 = vadd.f32 %v1889, %v1931
    %v1933 = vpop.f32.mrb[0].mxu0
    %v1934 = vadd.f32 %v1891, %v1933
    %v1935 = vpop.f32.mrb[0].mxu0
    %v1936 = vadd.f32 %v1893, %v1935
    %v1937 = vpop.f32.mrb[0].mxu0
    %v1938 = vadd.f32 %v1895, %v1937
    %1939 = vdwg.mxu0
    %1940 = vmatprep.subr.bf16.mxu0 %v1417
    %1941 = vmatpush1.bf16.msra.mxu0 %v1416
    %1942 = vmatprep.subr.bf16.mxu0 %v1421
    %1943 = vmatpush1.bf16.msra.mxu0 %v1420
    %1944 = vmatprep.subr.bf16.mxu0 %v1425
    %1945 = vmatpush1.bf16.msra.mxu0 %v1424
    %1946 = vmatprep.subr.bf16.mxu0 %v1429
    %1947 = vmatpush1.bf16.msra.mxu0 %v1428
    %1948 = vmatprep.subr.bf16.mxu0 %v1433
    %1949 = vmatpush1.bf16.msra.mxu0 %v1432
    %1950 = vmatprep.subr.bf16.mxu0 %v1437
    %1951 = vmatpush1.bf16.msra.mxu0 %v1436
    %1952 = vmatprep.subr.bf16.mxu0 %v1441
    %1953 = vmatpush1.bf16.msra.mxu0 %v1440
    %1954 = vmatprep.subr.bf16.mxu0 %v1445
    %1955 = vmatpush1.bf16.msra.mxu0 %v1444
    %1956 = vmatprep.subr.bf16.mxu0 %v1449
    %1957 = vmatpush1.bf16.msra.mxu0 %v1448
    %1958 = vmatprep.subr.bf16.mxu0 %v1453
    %1959 = vmatpush1.bf16.msra.mxu0 %v1452
    %1960 = vmatprep.subr.bf16.mxu0 %v1457
    %1961 = vmatpush1.bf16.msra.mxu0 %v1456
    %1962 = vmatprep.subr.bf16.mxu0 %v1461
    %1963 = vmatpush1.bf16.msra.mxu0 %v1460
    %1964 = vmatprep.subr.bf16.mxu0 %v1465
    %1965 = vmatpush1.bf16.msra.mxu0 %v1464
    %1966 = vmatprep.subr.bf16.mxu0 %v1469
    %1967 = vmatpush1.bf16.msra.mxu0 %v1468
    %1968 = vmatprep.subr.bf16.mxu0 %v1473
    %1969 = vmatpush1.bf16.msra.mxu0 %v1472
    %1970 = vmatprep.subr.bf16.mxu0 %v1477
    %1971 = vmatpush1.bf16.msra.mxu0 %v1476
    %1972 = vmatprep.mubr.bf16.mxu0 %v690
    %1973 = vmatmul.mubr.bf16.gmra.mrb[0].mxu0 %v689
    %v1974 = vpop.f32.mrb[0].mxu0
    %v1975 = vadd.f32 %v1932, %v1974
    %v1976 = vpop.f32.mrb[0].mxu0
    %v1977 = vadd.f32 %v1934, %v1976
    %v1978 = vpop.f32.mrb[0].mxu0
    %v1979 = vadd.f32 %v1936, %v1978
    %v1980 = vpop.f32.mrb[0].mxu0
    %v1981 = vadd.f32 %v1938, %v1980
    %1982 = vdwg.mxu0
    %1983 = vmatprep.subr.bf16.mxu0 %v1481
    %1984 = vmatpush1.bf16.msra.mxu0 %v1480
    %1985 = vmatprep.subr.bf16.mxu0 0
    %1986 = vmatpush1.bf16.msra.mxu0 0
    %1987 = vmatprep.subr.bf16.mxu0 0
    %1988 = vmatpush1.bf16.msra.mxu0 0
    %1989 = vmatprep.subr.bf16.mxu0 0
    %1990 = vmatpush1.bf16.msra.mxu0 0
    %1991 = vmatprep.subr.bf16.mxu0 0
    %1992 = vmatpush1.bf16.msra.mxu0 0
    %1993 = vmatprep.subr.bf16.mxu0 0
    %1994 = vmatpush1.bf16.msra.mxu0 0
    %1995 = vmatprep.subr.bf16.mxu0 0
    %1996 = vmatpush1.bf16.msra.mxu0 0
    %1997 = vmatprep.subr.bf16.mxu0 0
    %1998 = vmatpush1.bf16.msra.mxu0 0
    %1999 = vmatprep.subr.bf16.mxu0 0
    %2000 = vmatpush1.bf16.msra.mxu0 0
    %2001 = vmatprep.subr.bf16.mxu0 0
    %2002 = vmatpush1.bf16.msra.mxu0 0
    %2003 = vmatprep.subr.bf16.mxu0 0
    %2004 = vmatpush1.bf16.msra.mxu0 0
    %2005 = vmatprep.subr.bf16.mxu0 0
    %2006 = vmatpush1.bf16.msra.mxu0 0
    %2007 = vmatprep.subr.bf16.mxu0 0
    %2008 = vmatpush1.bf16.msra.mxu0 0
    %2009 = vmatprep.subr.bf16.mxu0 0
    %2010 = vmatpush1.bf16.msra.mxu0 0
    %2011 = vmatprep.subr.bf16.mxu0 0
    %2012 = vmatpush1.bf16.msra.mxu0 0
    %2013 = vmatprep.subr.bf16.mxu0 0
    %2014 = vmatpush1.bf16.msra.mxu0 0
    %2015 = vmatprep.mubr.bf16.mxu0 0
    %2016 = vmatmul.mubr.bf16.gmra.mrb[0].mxu0 %v1680
    %v2017 = vpop.f32.mrb[0].mxu0
    %v2018 = vadd.f32 %v1975, %v2017
    %v2019 = vpop.f32.mrb[0].mxu0
    %v2020 = vadd.f32 %v1977, %v2019
    %v2021 = vpop.f32.mrb[0].mxu0
    %v2022 = vadd.f32 %v1979, %v2021
    %v2023 = vpop.f32.mrb[0].mxu0
    %v2024 = vadd.f32 %v1981, %v2023
    %2025 = vdwg.mxu0
    %v2026 = vld [vmem:[%s4] sm:$0xf]
    %v2028 = vlaneseq
    %v2029 = vshrl.u32 %v2028, 7
    %v2030 = vsub.s32 0, %v2029
    %v2031 = vrot.slane %v2026, %v2030
    %v2032 = vlaneseq
    %v2033 = vshrl.u32 %v2032, 7
    %v2034 = vsub.s32 1, %v2033
    %v2035 = vrot.slane %v2026, %v2034
    %v2036 = vlaneseq
    %v2037 = vshrl.u32 %v2036, 7
    %v2038 = vsub.s32 2, %v2037
    %v2039 = vrot.slane %v2026, %v2038
    %v2040 = vlaneseq
    %v2041 = vshrl.u32 %v2040, 7
    %v2042 = vsub.s32 3, %v2041
    %v2043 = vrot.slane %v2026, %v2042
    %v2048 = vadd.f32 %v1846, %v2031
    %v2049 = vadd.f32 %v1848, %v2035
    %v2050 = vadd.f32 %v2018, %v2039
    %v2051 = vadd.f32 %v2020, %v2043
    %v2052 = vadd.f32 %v1850, %v2031
    %v2053 = vadd.f32 %v1852, %v2035
    %v2054 = vadd.f32 %v2022, %v2039
    %v2055 = vadd.f32 %v2024, %v2043
    %v2056 = vmax.f32 %v2048, 0.0
    %v2057 = vmax.f32 %v2049, 0.0
    %v2058 = vmax.f32 %v2050, 0.0
    %v2059 = vmax.f32 %v2051, 0.0
    %v2060 = vmax.f32 %v2052, 0.0
    %v2061 = vmax.f32 %v2053, 0.0
    %v2062 = vmax.f32 %v2054, 0.0
    %v2063 = vmax.f32 %v2055, 0.0
    %v2064 = vpack.c.bf16 %v2060, %v2056
    %v2065 = vpack.c.bf16 %v2061, %v2057
    %v2066 = vpack.c.bf16 %v2062, %v2058
    %v2067 = vpack.c.bf16 %v2063, %v2059
    %v2068 = vld [vmem:[#allocation8] sm:$0xff]
    %v2069 = vld [vmem:[#allocation8 + $0x8] sm:$0xff]
    %v2070 = vld [vmem:[#allocation8 + $0x10] sm:$0xff]
    %v2071 = vld [vmem:[#allocation8 + $0x18] sm:$0xff]
    %v2072 = vld [vmem:[#allocation8 + $0x20] sm:$0xff]
    %v2073 = vld [vmem:[#allocation8 + $0x28] sm:$0xff]
    %v2074 = vld [vmem:[#allocation8 + $0x30] sm:$0xff]
    %v2075 = vld [vmem:[#allocation8 + $0x38] sm:$0xff]
    %v2076 = vld [vmem:[#allocation8 + $0x40] sm:$0xff]
    %v2077 = vld [vmem:[#allocation8 + $0x48] sm:$0xff]
    %v2078 = vld [vmem:[#allocation8 + $0x50] sm:$0xff]
    %v2079 = vld [vmem:[#allocation8 + $0x58] sm:$0xff]
    %v2080 = vld [vmem:[#allocation8 + $0x60] sm:$0xff]
    %v2081 = vld [vmem:[#allocation8 + $0x68] sm:$0xff]
    %v2082 = vld [vmem:[#allocation8 + $0x70] sm:$0xff]
    %v2083 = vld [vmem:[#allocation8 + $0x78] sm:$0xff]
    %v2084 = vld [vmem:[#allocation8 + $0x80] sm:$0xff]
    %v2085 = vld [vmem:[#allocation8 + $0x88] sm:$0xff]
    %v2086 = vld [vmem:[#allocation8 + $0x90] sm:$0xff]
    %v2087 = vld [vmem:[#allocation8 + $0x98] sm:$0xff]
    %v2088 = vld [vmem:[#allocation8 + $0xa0] sm:$0xff]
    %v2089 = vld [vmem:[#allocation8 + $0xa8] sm:$0xff]
    %v2090 = vld [vmem:[#allocation8 + $0xb0] sm:$0xff]
    %v2091 = vld [vmem:[#allocation8 + $0xb8] sm:$0xff]
    %v2092 = vld [vmem:[#allocation8 + $0xc0] sm:$0xff]
    %v2093 = vld [vmem:[#allocation8 + $0xc8] sm:$0xff]
    %v2094 = vld [vmem:[#allocation8 + $0xd0] sm:$0xff]
    %v2095 = vld [vmem:[#allocation8 + $0xd8] sm:$0xff]
    %v2096 = vld [vmem:[#allocation8 + $0xe0] sm:$0xff]
    %v2097 = vld [vmem:[#allocation8 + $0xe8] sm:$0xff]
    %v2098 = vld [vmem:[#allocation8 + $0xf0] sm:$0xff]
    %v2099 = vld [vmem:[#allocation8 + $0xf8] sm:$0xff]
    %v2100 = vld [vmem:[#allocation8 + $0x100] sm:$0xff]
    %v2101 = vld [vmem:[#allocation8 + $0x108] sm:$0xff]
    %v2102 = vld [vmem:[#allocation8 + $0x110] sm:$0xff]
    %v2103 = vld [vmem:[#allocation8 + $0x118] sm:$0xff]
    %v2104 = vld [vmem:[#allocation8 + $0x120] sm:$0xff]
    %v2105 = vld [vmem:[#allocation8 + $0x128] sm:$0xff]
    %v2106 = vld [vmem:[#allocation8 + $0x130] sm:$0xff]
    %v2107 = vld [vmem:[#allocation8 + $0x138] sm:$0xff]
    %v2108 = vld [vmem:[#allocation8 + $0x140] sm:$0xff]
    %v2109 = vld [vmem:[#allocation8 + $0x148] sm:$0xff]
    %v2110 = vld [vmem:[#allocation8 + $0x150] sm:$0xff]
    %v2111 = vld [vmem:[#allocation8 + $0x158] sm:$0xff]
    %v2112 = vld [vmem:[#allocation8 + $0x160] sm:$0xff]
    %v2113 = vld [vmem:[#allocation8 + $0x168] sm:$0xff]
    %v2114 = vld [vmem:[#allocation8 + $0x170] sm:$0xff]
    %v2115 = vld [vmem:[#allocation8 + $0x178] sm:$0xff]
    %v2116 = vld [vmem:[#allocation8 + $0x180] sm:$0xff]
    %v2117 = vld [vmem:[#allocation8 + $0x188] sm:$0xff]
    %v2118 = vld [vmem:[#allocation8 + $0x190] sm:$0xff]
    %v2119 = vld [vmem:[#allocation8 + $0x198] sm:$0xff]
    %v2120 = vld [vmem:[#allocation8 + $0x1a0] sm:$0xff]
    %v2121 = vld [vmem:[#allocation8 + $0x1a8] sm:$0xff]
    %v2122 = vld [vmem:[#allocation8 + $0x1b0] sm:$0xff]
    %v2123 = vld [vmem:[#allocation8 + $0x1b8] sm:$0xff]
    %v2124 = vld [vmem:[#allocation8 + $0x1c0] sm:$0xff]
    %v2125 = vld [vmem:[#allocation8 + $0x1c8] sm:$0xff]
    %v2126 = vld [vmem:[#allocation8 + $0x1d0] sm:$0xff]
    %v2127 = vld [vmem:[#allocation8 + $0x1d8] sm:$0xff]
    %v2128 = vld [vmem:[#allocation8 + $0x1e0] sm:$0xff]
    %v2129 = vld [vmem:[#allocation8 + $0x1e8] sm:$0xff]
    %v2130 = vld [vmem:[#allocation8 + $0x1f0] sm:$0xff]
    %v2131 = vld [vmem:[#allocation8 + $0x1f8] sm:$0xff]
    %v2132 = vld [vmem:[%s6] sm:$0x3]
    %v2134 = vlaneseq
    %v2135 = vshrl.u32 %v2134, 7
    %v2136 = vsub.s32 0, %v2135
    %v2137 = vrot.slane %v2132, %v2136
    %v2138 = vlaneseq
    %v2139 = vshrl.u32 %v2138, 7
    %v2140 = vsub.s32 1, %v2139
    %v2141 = vrot.slane %v2132, %v2140
    %v2208 = vunpack.c.l.b16 %v2068
    %v2209 = vunpack.c.h.b16 %v2068
    %v2210 = vunpack.c.l.b16 %v2069
    %v2211 = vunpack.c.h.b16 %v2069
    %v2212 = vunpack.c.l.b16 %v2070
    %v2213 = vunpack.c.h.b16 %v2070
    %v2214 = vunpack.c.l.b16 %v2071
    %v2215 = vunpack.c.h.b16 %v2071
    %v2216 = vunpack.c.l.b16 %v2072
    %v2217 = vunpack.c.h.b16 %v2072
    %v2218 = vunpack.c.l.b16 %v2073
    %v2219 = vunpack.c.h.b16 %v2073
    %v2220 = vunpack.c.l.b16 %v2074
    %v2221 = vunpack.c.h.b16 %v2074
    %v2222 = vunpack.c.l.b16 %v2075
    %v2223 = vunpack.c.h.b16 %v2075
    %v2224 = vunpack.c.l.b16 %v2076
    %v2225 = vunpack.c.h.b16 %v2076
    %v2226 = vunpack.c.l.b16 %v2077
    %v2227 = vunpack.c.h.b16 %v2077
    %v2228 = vunpack.c.l.b16 %v2078
    %v2229 = vunpack.c.h.b16 %v2078
    %v2230 = vunpack.c.l.b16 %v2079
    %v2231 = vunpack.c.h.b16 %v2079
    %v2232 = vunpack.c.l.b16 %v2080
    %v2233 = vunpack.c.h.b16 %v2080
    %v2234 = vunpack.c.l.b16 %v2081
    %v2235 = vunpack.c.h.b16 %v2081
    %v2236 = vunpack.c.l.b16 %v2082
    %v2237 = vunpack.c.h.b16 %v2082
    %v2238 = vunpack.c.l.b16 %v2083
    %v2239 = vunpack.c.h.b16 %v2083
    %v2240 = vunpack.c.l.b16 %v2084
    %v2241 = vunpack.c.h.b16 %v2084
    %v2242 = vunpack.c.l.b16 %v2085
    %v2243 = vunpack.c.h.b16 %v2085
    %v2244 = vunpack.c.l.b16 %v2086
    %v2245 = vunpack.c.h.b16 %v2086
    %v2246 = vunpack.c.l.b16 %v2087
    %v2247 = vunpack.c.h.b16 %v2087
    %v2248 = vunpack.c.l.b16 %v2088
    %v2249 = vunpack.c.h.b16 %v2088
    %v2250 = vunpack.c.l.b16 %v2089
    %v2251 = vunpack.c.h.b16 %v2089
    %v2252 = vunpack.c.l.b16 %v2090
    %v2253 = vunpack.c.h.b16 %v2090
    %v2254 = vunpack.c.l.b16 %v2091
    %v2255 = vunpack.c.h.b16 %v2091
    %v2256 = vunpack.c.l.b16 %v2092
    %v2257 = vunpack.c.h.b16 %v2092
    %v2258 = vunpack.c.l.b16 %v2093
    %v2259 = vunpack.c.h.b16 %v2093
    %v2260 = vunpack.c.l.b16 %v2094
    %v2261 = vunpack.c.h.b16 %v2094
    %v2262 = vunpack.c.l.b16 %v2095
    %v2263 = vunpack.c.h.b16 %v2095
    %v2264 = vunpack.c.l.b16 %v2096
    %v2265 = vunpack.c.h.b16 %v2096
    %v2266 = vunpack.c.l.b16 %v2097
    %v2267 = vunpack.c.h.b16 %v2097
    %v2268 = vunpack.c.l.b16 %v2098
    %v2269 = vunpack.c.h.b16 %v2098
    %v2270 = vunpack.c.l.b16 %v2099
    %v2271 = vunpack.c.h.b16 %v2099
    %v2272 = vunpack.c.l.b16 %v2100
    %v2273 = vunpack.c.h.b16 %v2100
    %v2274 = vunpack.c.l.b16 %v2101
    %v2275 = vunpack.c.h.b16 %v2101
    %v2276 = vunpack.c.l.b16 %v2102
    %v2277 = vunpack.c.h.b16 %v2102
    %v2278 = vunpack.c.l.b16 %v2103
    %v2279 = vunpack.c.h.b16 %v2103
    %v2280 = vunpack.c.l.b16 %v2104
    %v2281 = vunpack.c.h.b16 %v2104
    %v2282 = vunpack.c.l.b16 %v2105
    %v2283 = vunpack.c.h.b16 %v2105
    %v2284 = vunpack.c.l.b16 %v2106
    %v2285 = vunpack.c.h.b16 %v2106
    %v2286 = vunpack.c.l.b16 %v2107
    %v2287 = vunpack.c.h.b16 %v2107
    %v2288 = vunpack.c.l.b16 %v2108
    %v2289 = vunpack.c.h.b16 %v2108
    %v2290 = vunpack.c.l.b16 %v2109
    %v2291 = vunpack.c.h.b16 %v2109
    %v2292 = vunpack.c.l.b16 %v2110
    %v2293 = vunpack.c.h.b16 %v2110
    %v2294 = vunpack.c.l.b16 %v2111
    %v2295 = vunpack.c.h.b16 %v2111
    %v2296 = vunpack.c.l.b16 %v2112
    %v2297 = vunpack.c.h.b16 %v2112
    %v2298 = vunpack.c.l.b16 %v2113
    %v2299 = vunpack.c.h.b16 %v2113
    %v2300 = vunpack.c.l.b16 %v2114
    %v2301 = vunpack.c.h.b16 %v2114
    %v2302 = vunpack.c.l.b16 %v2115
    %v2303 = vunpack.c.h.b16 %v2115
    %v2304 = vunpack.c.l.b16 %v2116
    %v2305 = vunpack.c.h.b16 %v2116
    %v2306 = vunpack.c.l.b16 %v2117
    %v2307 = vunpack.c.h.b16 %v2117
    %v2308 = vunpack.c.l.b16 %v2118
    %v2309 = vunpack.c.h.b16 %v2118
    %v2310 = vunpack.c.l.b16 %v2119
    %v2311 = vunpack.c.h.b16 %v2119
    %v2312 = vunpack.c.l.b16 %v2120
    %v2313 = vunpack.c.h.b16 %v2120
    %v2314 = vunpack.c.l.b16 %v2121
    %v2315 = vunpack.c.h.b16 %v2121
    %v2316 = vunpack.c.l.b16 %v2122
    %v2317 = vunpack.c.h.b16 %v2122
    %v2318 = vunpack.c.l.b16 %v2123
    %v2319 = vunpack.c.h.b16 %v2123
    %v2320 = vunpack.c.l.b16 %v2124
    %v2321 = vunpack.c.h.b16 %v2124
    %v2322 = vunpack.c.l.b16 %v2125
    %v2323 = vunpack.c.h.b16 %v2125
    %v2324 = vunpack.c.l.b16 %v2126
    %v2325 = vunpack.c.h.b16 %v2126
    %v2326 = vunpack.c.l.b16 %v2127
    %v2327 = vunpack.c.h.b16 %v2127
    %v2328 = vunpack.c.l.b16 %v2128
    %v2329 = vunpack.c.h.b16 %v2128
    %v2330 = vunpack.c.l.b16 %v2129
    %v2331 = vunpack.c.h.b16 %v2129
    %v2332 = vunpack.c.l.b16 %v2130
    %v2333 = vunpack.c.h.b16 %v2130
    %v2334 = vunpack.c.l.b16 %v2131
    %v2335 = vunpack.c.h.b16 %v2131
    %v2336 = vpack.c.b16 %v2210, %v2208
    %v2337 = vpack.c.b16 %v2211, %v2209
    %v2338 = vpack.c.b16 %v2214, %v2212
    %v2339 = vpack.c.b16 %v2215, %v2213
    %v2340 = vpack.c.b16 %v2218, %v2216
    %v2341 = vpack.c.b16 %v2219, %v2217
    %v2342 = vpack.c.b16 %v2222, %v2220
    %v2343 = vpack.c.b16 %v2223, %v2221
    %v2344 = vpack.c.b16 %v2226, %v2224
    %v2345 = vpack.c.b16 %v2227, %v2225
    %v2346 = vpack.c.b16 %v2230, %v2228
    %v2347 = vpack.c.b16 %v2231, %v2229
    %v2348 = vpack.c.b16 %v2234, %v2232
    %v2349 = vpack.c.b16 %v2235, %v2233
    %v2350 = vpack.c.b16 %v2238, %v2236
    %v2351 = vpack.c.b16 %v2239, %v2237
    %v2352 = vpack.c.b16 %v2242, %v2240
    %v2353 = vpack.c.b16 %v2243, %v2241
    %v2354 = vpack.c.b16 %v2246, %v2244
    %v2355 = vpack.c.b16 %v2247, %v2245
    %v2356 = vpack.c.b16 %v2250, %v2248
    %v2357 = vpack.c.b16 %v2251, %v2249
    %v2358 = vpack.c.b16 %v2254, %v2252
    %v2359 = vpack.c.b16 %v2255, %v2253
    %v2360 = vpack.c.b16 %v2258, %v2256
    %v2361 = vpack.c.b16 %v2259, %v2257
    %v2362 = vpack.c.b16 %v2262, %v2260
    %v2363 = vpack.c.b16 %v2263, %v2261
    %v2364 = vpack.c.b16 %v2266, %v2264
    %v2365 = vpack.c.b16 %v2267, %v2265
    %v2366 = vpack.c.b16 %v2270, %v2268
    %v2367 = vpack.c.b16 %v2271, %v2269
    %v2368 = vpack.c.b16 %v2274, %v2272
    %v2369 = vpack.c.b16 %v2275, %v2273
    %v2370 = vpack.c.b16 %v2278, %v2276
    %v2371 = vpack.c.b16 %v2279, %v2277
    %v2372 = vpack.c.b16 %v2282, %v2280
    %v2373 = vpack.c.b16 %v2283, %v2281
    %v2374 = vpack.c.b16 %v2286, %v2284
    %v2375 = vpack.c.b16 %v2287, %v2285
    %v2376 = vpack.c.b16 %v2290, %v2288
    %v2377 = vpack.c.b16 %v2291, %v2289
    %v2378 = vpack.c.b16 %v2294, %v2292
    %v2379 = vpack.c.b16 %v2295, %v2293
    %v2380 = vpack.c.b16 %v2298, %v2296
    %v2381 = vpack.c.b16 %v2299, %v2297
    %v2382 = vpack.c.b16 %v2302, %v2300
    %v2383 = vpack.c.b16 %v2303, %v2301
    %v2384 = vpack.c.b16 %v2306, %v2304
    %v2385 = vpack.c.b16 %v2307, %v2305
    %v2386 = vpack.c.b16 %v2310, %v2308
    %v2387 = vpack.c.b16 %v2311, %v2309
    %v2388 = vpack.c.b16 %v2314, %v2312
    %v2389 = vpack.c.b16 %v2315, %v2313
    %v2390 = vpack.c.b16 %v2318, %v2316
    %v2391 = vpack.c.b16 %v2319, %v2317
    %v2392 = vpack.c.b16 %v2322, %v2320
    %v2393 = vpack.c.b16 %v2323, %v2321
    %v2394 = vpack.c.b16 %v2326, %v2324
    %v2395 = vpack.c.b16 %v2327, %v2325
    %v2396 = vpack.c.b16 %v2330, %v2328
    %v2397 = vpack.c.b16 %v2331, %v2329
    %v2398 = vpack.c.b16 %v2334, %v2332
    %v2399 = vpack.c.b16 %v2335, %v2333
    %2464 = vmatprep.subr.bf16.mxu0 %v2337
    %2465 = vmatpush1.bf16.msra.mxu0 %v2336
    %2466 = vmatprep.subr.bf16.mxu0 %v2339
    %2467 = vmatpush1.bf16.msra.mxu0 %v2338
    %2468 = vmatprep.subr.bf16.mxu0 %v2341
    %2469 = vmatpush1.bf16.msra.mxu0 %v2340
    %2470 = vmatprep.subr.bf16.mxu0 %v2343
    %2471 = vmatpush1.bf16.msra.mxu0 %v2342
    %2472 = vmatprep.subr.bf16.mxu0 %v2345
    %2473 = vmatpush1.bf16.msra.mxu0 %v2344
    %2474 = vmatprep.subr.bf16.mxu0 %v2347
    %2475 = vmatpush1.bf16.msra.mxu0 %v2346
    %2476 = vmatprep.subr.bf16.mxu0 %v2349
    %2477 = vmatpush1.bf16.msra.mxu0 %v2348
    %2478 = vmatprep.subr.bf16.mxu0 %v2351
    %2479 = vmatpush1.bf16.msra.mxu0 %v2350
    %2480 = vmatprep.subr.bf16.mxu0 %v2353
    %2481 = vmatpush1.bf16.msra.mxu0 %v2352
    %2482 = vmatprep.subr.bf16.mxu0 %v2355
    %2483 = vmatpush1.bf16.msra.mxu0 %v2354
    %2484 = vmatprep.subr.bf16.mxu0 %v2357
    %2485 = vmatpush1.bf16.msra.mxu0 %v2356
    %2486 = vmatprep.subr.bf16.mxu0 %v2359
    %2487 = vmatpush1.bf16.msra.mxu0 %v2358
    %2488 = vmatprep.subr.bf16.mxu0 %v2361
    %2489 = vmatpush1.bf16.msra.mxu0 %v2360
    %2490 = vmatprep.subr.bf16.mxu0 %v2363
    %2491 = vmatpush1.bf16.msra.mxu0 %v2362
    %2492 = vmatprep.subr.bf16.mxu0 %v2365
    %2493 = vmatpush1.bf16.msra.mxu0 %v2364
    %2494 = vmatprep.subr.bf16.mxu0 %v2367
    %2495 = vmatpush1.bf16.msra.mxu0 %v2366
    %2496 = vmatprep.mubr.bf16.mxu0 %v2065
    %2497 = vmatmul.mubr.bf16.gmra.mrb[0].mxu0 %v2064
    %v2498 = vpop.f32.mrb[0].mxu0
    %v2499 = vadd.f32 %v2137, %v2498
    %v2500 = vpop.f32.mrb[0].mxu0
    %v2501 = vadd.f32 %v2141, %v2500
    %v2502 = vpop.f32.mrb[0].mxu0
    %v2503 = vadd.f32 %v2137, %v2502
    %v2504 = vpop.f32.mrb[0].mxu0
    %v2505 = vadd.f32 %v2141, %v2504
    %2506 = vdwg.mxu0
    %2507 = vmatprep.subr.bf16.mxu0 %v2369
    %2508 = vmatpush1.bf16.msra.mxu0 %v2368
    %2509 = vmatprep.subr.bf16.mxu0 %v2371
    %2510 = vmatpush1.bf16.msra.mxu0 %v2370
    %2511 = vmatprep.subr.bf16.mxu0 %v2373
    %2512 = vmatpush1.bf16.msra.mxu0 %v2372
    %2513 = vmatprep.subr.bf16.mxu0 %v2375
    %2514 = vmatpush1.bf16.msra.mxu0 %v2374
    %2515 = vmatprep.subr.bf16.mxu0 %v2377
    %2516 = vmatpush1.bf16.msra.mxu0 %v2376
    %2517 = vmatprep.subr.bf16.mxu0 %v2379
    %2518 = vmatpush1.bf16.msra.mxu0 %v2378
    %2519 = vmatprep.subr.bf16.mxu0 %v2381
    %2520 = vmatpush1.bf16.msra.mxu0 %v2380
    %2521 = vmatprep.subr.bf16.mxu0 %v2383
    %2522 = vmatpush1.bf16.msra.mxu0 %v2382
    %2523 = vmatprep.subr.bf16.mxu0 %v2385
    %2524 = vmatpush1.bf16.msra.mxu0 %v2384
    %2525 = vmatprep.subr.bf16.mxu0 %v2387
    %2526 = vmatpush1.bf16.msra.mxu0 %v2386
    %2527 = vmatprep.subr.bf16.mxu0 %v2389
    %2528 = vmatpush1.bf16.msra.mxu0 %v2388
    %2529 = vmatprep.subr.bf16.mxu0 %v2391
    %2530 = vmatpush1.bf16.msra.mxu0 %v2390
    %2531 = vmatprep.subr.bf16.mxu0 %v2393
    %2532 = vmatpush1.bf16.msra.mxu0 %v2392
    %2533 = vmatprep.subr.bf16.mxu0 %v2395
    %2534 = vmatpush1.bf16.msra.mxu0 %v2394
    %2535 = vmatprep.subr.bf16.mxu0 %v2397
    %2536 = vmatpush1.bf16.msra.mxu0 %v2396
    %2537 = vmatprep.subr.bf16.mxu0 %v2399
    %2538 = vmatpush1.bf16.msra.mxu0 %v2398
    %2539 = vmatprep.mubr.bf16.mxu0 %v2067
    %2540 = vmatmul.mubr.bf16.gmra.mrb[0].mxu0 %v2066
    %v2541 = vpop.f32.mrb[0].mxu0
    %v2542 = vadd.f32 %v2499, %v2541
    %v2543 = vpop.f32.mrb[0].mxu0
    %v2544 = vadd.f32 %v2501, %v2543
    %v2545 = vpop.f32.mrb[0].mxu0
    %v2546 = vadd.f32 %v2503, %v2545
    %v2547 = vpop.f32.mrb[0].mxu0
    %v2548 = vadd.f32 %v2505, %v2547
    %2549 = vdwg.mxu0
    %v2550 = vmax.f32 %v2542, 0.0
    %v2551 = vmax.f32 %v2544, 0.0
    %v2552 = vmax.f32 %v2546, 0.0
    %v2553 = vmax.f32 %v2548, 0.0
    %v2554 = vld [vmem:[%s7] sm:$0x3]
    %v2556 = vlaneseq
    %v2557 = vshrl.u32 %v2556, 7
    %v2558 = vsub.s32 0, %v2557
    %v2559 = vrot.slane %v2554, %v2558
    %v2560 = vlaneseq
    %v2561 = vshrl.u32 %v2560, 7
    %v2562 = vsub.s32 1, %v2561
    %v2563 = vrot.slane %v2554, %v2562
    %v2566 = vmul.f32 %v2550, %v2559
    %v2567 = vmul.f32 %v2551, %v2563
    %v2568 = vmul.f32 %v2552, %v2559
    %v2569 = vmul.f32 %v2553, %v2563
    %v2570 = vadd.f32 %v2566, %v2567
    %2571 = vadd.xlane.f32.xlu0 %v2570
    %v2572 = vpop.xlane.xlu0 %2571
    %v2573 = vadd.f32 %v2568, %v2569
    %2574 = vadd.xlane.f32.xlu0 %v2573
    %v2575 = vpop.xlane.xlu0 %2574
    %s2576 = sld [smem:[#allocation2]]
    %v2577 = vstv %s2576
    %v2578 = vadd.f32 %v2572, %v2577
    %v2579 = vadd.f32 %v2575, %v2577
    %vm2580 = vcmask 7168
    %2581 = vst.msk [vmem:[%s9] sm:$0xff] %vm2580, %v2578
    %2582 = vst.msk [vmem:[%s9 + $0x8] sm:$0xff] %vm2580, %v2579
    // Predicated region
    $region54: #{tpu_custom_call.1} parent=1 // pred_check
      _
    $region55: #{tpu_custom_call.1} parent=1 // pred_check_branch
      %2584 = sbr.rel (0) target = $region57
    $region56: #{tpu_custom_call.1} parent=1 // pred_region
      _
    $region57: #{tpu_custom_call.1} parent=1 // pred_fallthru
      _
    // Predicated region
    $region58: #{tpu_custom_call.1} parent=1 // pred_check
      _
    $region59: #{tpu_custom_call.1} parent=1 // pred_check_branch
      %2586 = sbr.rel (0) target = $region61
    $region60: #{tpu_custom_call.1} parent=1 // pred_region
      _
    $region61: #{tpu_custom_call.1} parent=1 // pred_fallthru
      _
    %2587 = vsyncpa [#allocation4], 1
    %2588 = vsyncpa [#allocation6], 1
    %2589 = vsyncpa [#allocation9], 1

</llo_original>
